<compile_context>
chip_gen: v6e
topology: v6e:2x2x1
jax: 0.10.0
libtpu: 0.0.40
codegen_flags: <defaults>
</compile_context>

<pallas_src>
from functools import partial

import jax
import jax.numpy as jnp
from jax import lax
from jax.experimental import pallas as pl
from jax.experimental.pallas import tpu as pltpu


# ---------------------------------------------------------------------------
# Fused Pallas kernel (one batch element per grid step)
# ---------------------------------------------------------------------------
def _res_encoder_kernel(x_ref, w1_ref, b1_ref, w2_ref, b2_ref,
                        w1x1_ref, b1x1_ref, mask_ref, o_ref, h1_ref, *, Wp):
    """relu( relu(bn2(conv2(relu(bn1(conv1(x)))))) + conv1x1(x) ).

    Flat-slab layout (Wp = W + 2):
      x_ref    : (1, Cin, F)   bf16; zero-padded image (2 rows / 1 col each
                                side) flattened, with 1 leading + 3 trailing
                                zeros, F = (H+4)*Wp + 4.
      w1_ref   : (9, Co, Cin)  bf16; conv1 tap weights, BN1 scale folded.
      b1_ref   : (Co, 1)       f32;  folded BN1 bias (includes conv1 bias).
      w2_ref   : (9, Co, Co)   bf16; conv2 tap weights, BN2 scale folded.
      b2_ref   : (Co, 1)       f32.
      w1x1_ref : (Co, Cin)     bf16; 1x1 residual conv weight.
      b1x1_ref : (Co, 1)       f32.
      mask_ref : (1, L1)       f32;  1 on the h1 interior, 0 on the padding
                                ring / tail, L1 = (H+2)*Wp + 2.
      o_ref    : (1, Co, L2)   f32;  output over the width-padded grid,
                                L2 = H*Wp (2 trash columns per row, sliced
                                off by the wrapper).
      h1_ref   : (Co, L1)      bf16 VMEM scratch; padded conv1 activation.
    """
    Co = o_ref.shape[1]
    L2 = o_ref.shape[2]
    L1 = mask_ref.shape[1]

    # ---- conv1 (+ folded BN1): 9 shifted-window matmuls, f32 accumulation --
    acc1 = jnp.zeros((Co, L1), dtype=jnp.float32)
    for ky in range(3):
        for kx in range(3):
            t = ky * 3 + kx
            a = ky * Wp + kx                      # static flat tap offset
            acc1 = acc1 + jnp.dot(w1_ref[t], x_ref[0, :, a:a + L1],
                                  preferred_element_type=jnp.float32)

    # bias + ReLU, then force the conv-padding ring (and tail) to exact zero
    # so conv2 sees correct zero padding.  h1 stays in VMEM only.
    h1_ref[...] = (jnp.maximum(acc1 + b1_ref[...], 0.0)
                   * mask_ref[...]).astype(h1_ref.dtype)

    # ---- conv2 (+ folded BN2): 9 shifted-window matmuls over the h1 slab ---
    acc2 = jnp.zeros((Co, L2), dtype=jnp.float32)
    for ky in range(3):
        for kx in range(3):
            t = ky * 3 + kx
            a = ky * Wp + kx
            acc2 = acc2 + jnp.dot(w2_ref[t], h1_ref[:, a:a + L2],
                                  preferred_element_type=jnp.float32)
    main = jnp.maximum(acc2 + b2_ref[...], 0.0)

    # ---- 1x1 residual branch: reuses the already-resident input slab -------
    res = jnp.dot(w1x1_ref[...], x_ref[0, :, 2 * Wp + 2:2 * Wp + 2 + L2],
                  preferred_element_type=jnp.float32) + b1x1_ref[...]

    # ---- residual add + final ReLU -----------------------------------------
    o_ref[0] = jnp.maximum(main + res, 0.0).astype(o_ref.dtype)


# ---------------------------------------------------------------------------
# Host-side wrapper (weight folding + flat padded layout)
# ---------------------------------------------------------------------------
def _fold_conv3x3(w, out_scale):
    """(Co, Cin, 3, 3) -> (9, Co, Cin) with per-output BN scale folded in."""
    co, ci = w.shape[0], w.shape[1]
    wt = jnp.transpose(w * out_scale[:, None, None, None], (2, 3, 0, 1))
    return wt.reshape(9, co, ci)


@jax.jit
def res_encoder_forward(x_nchw, params):
    """ResEncoder forward.  x_nchw: (N, Cin, H, W) f32 -> (N, Cout, H, W)."""
    x = x_nchw.astype(jnp.float32)
    N, Cin, H, W = x.shape
    Co = params["w1"].shape[0]
    Wp, Hp = W + 2, H + 2
    L1 = Hp * Wp + 2            # padded h1 grid + 2-element tail
    L2 = H * Wp                 # output grid (2 trash columns per row)
    F = (H + 4) * Wp + 4        # padded/flattened input length
    eps = 1e-5

    # Fold inference-mode BatchNorm into the conv weights / biases.
    scale1 = params["g1"] / jnp.sqrt(params["v1"] + eps)
    bias1 = params["be1"] + (params["b1"] - params["m1"]) * scale1
    scale2 = params["g2"] / jnp.sqrt(params["v2"] + eps)
    bias2 = params["be2"] + (params["b2"] - params["m2"]) * scale2

    w1_taps = _fold_conv3x3(params["w1"], scale1).astype(jnp.bfloat16)
    w2_taps = _fold_conv3x3(params["w2"], scale2).astype(jnp.bfloat16)
    w1x1 = params["w1x1"][:, :, 0, 0].astype(jnp.bfloat16)           # (Co, Cin)
    b1 = bias1.reshape(Co, 1)
    b2 = bias2.reshape(Co, 1)
    b1x1 = params["b1x1"].reshape(Co, 1)

    # Zero-pad the (small) input once on the host: 2 rows / 1 col each side,
    # flatten, add 1 leading + 3 trailing zeros so every tap slice is in
    # bounds.  Cast to bf16 so the DMA moves half the bytes.
    xp = jnp.pad(x, ((0, 0), (0, 0), (2, 2), (1, 1)))
    xf = jnp.pad(xp.reshape(N, Cin, (H + 4) * Wp),
                 ((0, 0), (0, 0), (1, 3))).astype(jnp.bfloat16)       # (N,Cin,F)

    # 0/1 mask selecting the valid h1 interior of the padded grid.
    m = jnp.zeros((Hp, Wp), jnp.float32).at[1:H + 1, 1:W + 1].set(1.0)
    mask = jnp.concatenate([m.reshape(-1),
                            jnp.zeros((2,), jnp.float32)]).reshape(1, L1)

    out_flat = pl.pallas_call(
        partial(_res_encoder_kernel, Wp=Wp),
        out_shape=jax.ShapeDtypeStruct((N, Co, L2), jnp.float32),
        grid=(N,),
        in_specs=[
            pl.BlockSpec((1, Cin, F), lambda n: (n, 0, 0)),     # input slab
            pl.BlockSpec((9, Co, Cin), lambda n: (0, 0, 0)),    # conv1 taps
            pl.BlockSpec((Co, 1), lambda n: (0, 0)),            # b1 (folded)
            pl.BlockSpec((9, Co, Co), lambda n: (0, 0, 0)),     # conv2 taps
            pl.BlockSpec((Co, 1), lambda n: (0, 0)),            # b2 (folded)
            pl.BlockSpec((Co, Cin), lambda n: (0, 0)),          # conv1x1
            pl.BlockSpec((Co, 1), lambda n: (0, 0)),            # b1x1
            pl.BlockSpec((1, L1), lambda n: (0, 0)),            # interior mask
        ],
        out_specs=pl.BlockSpec((1, Co, L2), lambda n: (n, 0, 0)),
        scratch_shapes=[
            pltpu.VMEM((Co, L1), jnp.bfloat16),                 # padded h1
        ],
        compiler_params=pltpu.CompilerParams(
            dimension_semantics=("parallel",),
            # Tiny here; raise towards ~64-100 MiB on v5e/v6e (keep <=48 MiB
            # on v7x) when using larger spatial tiles.
            vmem_limit_bytes=48 * 1024 * 1024),
    )(xf, w1_taps, b1, w2_taps, b2, w1x1, b1x1, mask)

    # Split the flat grid back into rows and drop the 2 trash columns per row.
    # (The reshape is a free metadata op; only the narrow slice copies.)
    return out_flat.reshape(N, Co, H, Wp)[:, :, :, :W]


# ---------------------------------------------------------------------------
# Pure-JAX reference (PyTorch ResEncoder semantics, f32)
# ---------------------------------------------------------------------------
def ref_forward(x, p, eps=1e-5):
    def conv(x, w, b, pad):
        y = lax.conv_general_dilated(
            x, w, window_strides=(1, 1),
            padding=[(pad, pad), (pad, pad)],
            dimension_numbers=("NCHW", "OIHW", "NCHW"))
        return y + b[None, :, None, None]

    def bn(x, g, be, m, v):
        return (g[None, :, None, None] * (x - m[None, :, None, None])
                / jnp.sqrt(v[None, :, None, None] + eps)
                + be[None, :, None, None])

    residual = conv(x, p["w1x1"], p["b1x1"], 0)
    out = jax.nn.relu(bn(conv(x, p["w1"], p["b1"], 1),
                         p["g1"], p["be1"], p["m1"], p["v1"]))
    out = jax.nn.relu(bn(conv(out, p["w2"], p["b2"], 1),
                         p["g2"], p["be2"], p["m2"], p["v2"]))
    return jax.nn.relu(out + residual)


# ---------------------------------------------------------------------------
# Main
# ---------------------------------------------------------------------------
def init_params(key, in_channels, out_channels):
    ks = jax.random.split(key, 8)
    return {
        "w1": 0.2 * jax.random.normal(ks[0], (out_channels, in_channels, 3, 3), jnp.float32),
        "b1": 0.1 * jax.random.normal(ks[1], (out_channels,), jnp.float32),
        "w2": 0.2 * jax.random.normal(ks[2], (out_channels, out_channels, 3, 3), jnp.float32),
        "b2": 0.1 * jax.random.normal(ks[3], (out_channels,), jnp.float32),
        "w1x1": 0.2 * jax.random.normal(ks[4], (out_channels, in_channels, 1, 1), jnp.float32),
        "b1x1": 0.1 * jax.random.normal(ks[5], (out_channels,), jnp.float32),
        # BatchNorm1 (inference-mode, deterministic non-trivial stats)
        "g1": 1.0 + 0.05 * jnp.arange(out_channels, dtype=jnp.float32),
        "be1": 0.02 * jnp.arange(out_channels, dtype=jnp.float32),
        "m1": 0.1 * jax.random.normal(ks[6], (out_channels,), jnp.float32),
        "v1": 1.0 + 0.1 * jnp.abs(jax.random.normal(ks[7], (out_channels,), jnp.float32)),
        # BatchNorm2
        "g2": 1.0 - 0.03 * jnp.arange(out_channels, dtype=jnp.float32),
        "be2": -0.01 * jnp.arange(out_channels, dtype=jnp.float32),
        "m2": 0.05 * jnp.ones((out_channels,), jnp.float32),
        "v2": 1.2 * jnp.ones((out_channels,), jnp.float32),
    }


if __name__ == "__main__":
    N, Cin, H, W = 2, 4, 16, 16
    Cout = 8

    key = jax.random.PRNGKey(0)
    k_x, k_p = jax.random.split(key)
    x = jax.random.normal(k_x, (N, Cin, H, W), jnp.float32)
    params = init_params(k_p, Cin, Cout)

    out = jax.block_until_ready(res_encoder_forward(x, params))
    ref = jax.block_until_ready(ref_forward(x, params))

    assert out.shape == (N, Cout, H, W), out.shape
    # bf16 weights/activations on the MXU with f32 accumulation: check the
    # max error against ~2% of the output dynamic range.
    max_err = float(jnp.max(jnp.abs(out - ref)))
    ref_scale = float(jnp.max(jnp.abs(ref)))
    assert max_err <= 2e-2 * ref_scale + 2e-2, (max_err, ref_scale)

    print("KERNEL_OK")
</pallas_src>

<mosaic_0001>
module attributes {stable_mosaic.version = 11 : i64} {
  func.func @_res_encoder_kernel(%arg0: i32, %arg1: memref<1x4x364xbf16, #tpu.memory_space<vmem>>, %arg2: memref<9x8x4xbf16, #tpu.memory_space<vmem>>, %arg3: memref<8x1xf32, #tpu.memory_space<vmem>>, %arg4: memref<9x8x8xbf16, #tpu.memory_space<vmem>>, %arg5: memref<8x1xf32, #tpu.memory_space<vmem>>, %arg6: memref<8x4xbf16, #tpu.memory_space<vmem>>, %arg7: memref<8x1xf32, #tpu.memory_space<vmem>>, %arg8: memref<1x326xf32, #tpu.memory_space<vmem>>, %arg9: memref<1x8x288xf32, #tpu.memory_space<vmem>>, %arg10: memref<8x326xbf16, #tpu.memory_space<vmem>>) attributes {dimension_semantics = [#tpu.dimension_semantics<parallel>], iteration_bounds = array<i64: 2>, scalar_prefetch = 0 : i64, scratch_operands = 1 : i64, tpu.core_type = #tpu.core_type<tc>, window_params = [{transform_indices = @transform_0, window_bounds = array<i64: 1, 4, 364>}, {pipeline_mode = #tpu.pipeline_mode<synchronous>, transform_indices = @transform_1, window_bounds = array<i64: 9, 8, 4>}, {pipeline_mode = #tpu.pipeline_mode<synchronous>, transform_indices = @transform_2, window_bounds = array<i64: 8, 1>}, {pipeline_mode = #tpu.pipeline_mode<synchronous>, transform_indices = @transform_3, window_bounds = array<i64: 9, 8, 8>}, {pipeline_mode = #tpu.pipeline_mode<synchronous>, transform_indices = @transform_4, window_bounds = array<i64: 8, 1>}, {pipeline_mode = #tpu.pipeline_mode<synchronous>, transform_indices = @transform_5, window_bounds = array<i64: 8, 4>}, {pipeline_mode = #tpu.pipeline_mode<synchronous>, transform_indices = @transform_6, window_bounds = array<i64: 8, 1>}, {pipeline_mode = #tpu.pipeline_mode<synchronous>, transform_indices = @transform_7, window_bounds = array<i64: 1, 326>}, {transform_indices = @transform_8, window_bounds = array<i64: 1, 8, 288>}]} {
    %cst = arith.constant 0.000000e+00 : f32
    %0 = vector.broadcast %cst : f32 to vector<8x326xf32>
    %c0 = arith.constant 0 : index
    %c0_0 = arith.constant 0 : index
    %c0_1 = arith.constant 0 : index
    %1 = vector.load %arg2[%c0, %c0_0, %c0_1] : memref<9x8x4xbf16, #tpu.memory_space<vmem>>, vector<1x8x4xbf16>
    %2 = vector.shape_cast %1 : vector<1x8x4xbf16> to vector<8x4xbf16>
    %c0_2 = arith.constant 0 : index
    %c0_3 = arith.constant 0 : index
    %c0_4 = arith.constant 0 : index
    %3 = vector.load %arg1[%c0_2, %c0_3, %c0_4] : memref<1x4x364xbf16, #tpu.memory_space<vmem>>, vector<1x4x326xbf16>
    %4 = vector.shape_cast %3 : vector<1x4x326xbf16> to vector<4x326xbf16>
    %cst_5 = arith.constant dense<0.000000e+00> : vector<8x326xf32>
    %5 = tpu.matmul %2, %4, %cst_5 {dimension_numbers = #tpu.dot_dimension_numbers<[1], [0], [0], [1], [0, 0, 1, 1], [], []>} : vector<8x4xbf16>, vector<4x326xbf16>, vector<8x326xf32> -> vector<8x326xf32>
    %6 = arith.addf %0, %5 : vector<8x326xf32>
    %c1 = arith.constant 1 : index
    %c0_6 = arith.constant 0 : index
    %c0_7 = arith.constant 0 : index
    %7 = vector.load %arg2[%c1, %c0_6, %c0_7] : memref<9x8x4xbf16, #tpu.memory_space<vmem>>, vector<1x8x4xbf16>
    %8 = vector.shape_cast %7 : vector<1x8x4xbf16> to vector<8x4xbf16>
    %c0_8 = arith.constant 0 : index
    %c0_9 = arith.constant 0 : index
    %c1_10 = arith.constant 1 : index
    %9 = vector.load %arg1[%c0_8, %c0_9, %c1_10] : memref<1x4x364xbf16, #tpu.memory_space<vmem>>, vector<1x4x326xbf16>
    %10 = vector.shape_cast %9 : vector<1x4x326xbf16> to vector<4x326xbf16>
    %cst_11 = arith.constant dense<0.000000e+00> : vector<8x326xf32>
    %11 = tpu.matmul %8, %10, %cst_11 {dimension_numbers = #tpu.dot_dimension_numbers<[1], [0], [0], [1], [0, 0, 1, 1], [], []>} : vector<8x4xbf16>, vector<4x326xbf16>, vector<8x326xf32> -> vector<8x326xf32>
    %12 = arith.addf %6, %11 : vector<8x326xf32>
    %c2 = arith.constant 2 : index
    %c0_12 = arith.constant 0 : index
    %c0_13 = arith.constant 0 : index
    %13 = vector.load %arg2[%c2, %c0_12, %c0_13] : memref<9x8x4xbf16, #tpu.memory_space<vmem>>, vector<1x8x4xbf16>
    %14 = vector.shape_cast %13 : vector<1x8x4xbf16> to vector<8x4xbf16>
    %c0_14 = arith.constant 0 : index
    %c0_15 = arith.constant 0 : index
    %c2_16 = arith.constant 2 : index
    %15 = vector.load %arg1[%c0_14, %c0_15, %c2_16] : memref<1x4x364xbf16, #tpu.memory_space<vmem>>, vector<1x4x326xbf16>
    %16 = vector.shape_cast %15 : vector<1x4x326xbf16> to vector<4x326xbf16>
    %cst_17 = arith.constant dense<0.000000e+00> : vector<8x326xf32>
    %17 = tpu.matmul %14, %16, %cst_17 {dimension_numbers = #tpu.dot_dimension_numbers<[1], [0], [0], [1], [0, 0, 1, 1], [], []>} : vector<8x4xbf16>, vector<4x326xbf16>, vector<8x326xf32> -> vector<8x326xf32>
    %18 = arith.addf %12, %17 : vector<8x326xf32>
    %c3 = arith.constant 3 : index
    %c0_18 = arith.constant 0 : index
    %c0_19 = arith.constant 0 : index
    %19 = vector.load %arg2[%c3, %c0_18, %c0_19] : memref<9x8x4xbf16, #tpu.memory_space<vmem>>, vector<1x8x4xbf16>
    %20 = vector.shape_cast %19 : vector<1x8x4xbf16> to vector<8x4xbf16>
    %c0_20 = arith.constant 0 : index
    %c0_21 = arith.constant 0 : index
    %c18 = arith.constant 18 : index
    %21 = vector.load %arg1[%c0_20, %c0_21, %c18] : memref<1x4x364xbf16, #tpu.memory_space<vmem>>, vector<1x4x326xbf16>
    %22 = vector.shape_cast %21 : vector<1x4x326xbf16> to vector<4x326xbf16>
    %cst_22 = arith.constant dense<0.000000e+00> : vector<8x326xf32>
    %23 = tpu.matmul %20, %22, %cst_22 {dimension_numbers = #tpu.dot_dimension_numbers<[1], [0], [0], [1], [0, 0, 1, 1], [], []>} : vector<8x4xbf16>, vector<4x326xbf16>, vector<8x326xf32> -> vector<8x326xf32>
    %24 = arith.addf %18, %23 : vector<8x326xf32>
    %c4 = arith.constant 4 : index
    %c0_23 = arith.constant 0 : index
    %c0_24 = arith.constant 0 : index
    %25 = vector.load %arg2[%c4, %c0_23, %c0_24] : memref<9x8x4xbf16, #tpu.memory_space<vmem>>, vector<1x8x4xbf16>
    %26 = vector.shape_cast %25 : vector<1x8x4xbf16> to vector<8x4xbf16>
    %c0_25 = arith.constant 0 : index
    %c0_26 = arith.constant 0 : index
    %c19 = arith.constant 19 : index
    %27 = vector.load %arg1[%c0_25, %c0_26, %c19] : memref<1x4x364xbf16, #tpu.memory_space<vmem>>, vector<1x4x326xbf16>
    %28 = vector.shape_cast %27 : vector<1x4x326xbf16> to vector<4x326xbf16>
    %cst_27 = arith.constant dense<0.000000e+00> : vector<8x326xf32>
    %29 = tpu.matmul %26, %28, %cst_27 {dimension_numbers = #tpu.dot_dimension_numbers<[1], [0], [0], [1], [0, 0, 1, 1], [], []>} : vector<8x4xbf16>, vector<4x326xbf16>, vector<8x326xf32> -> vector<8x326xf32>
    %30 = arith.addf %24, %29 : vector<8x326xf32>
    %c5 = arith.constant 5 : index
    %c0_28 = arith.constant 0 : index
    %c0_29 = arith.constant 0 : index
    %31 = vector.load %arg2[%c5, %c0_28, %c0_29] : memref<9x8x4xbf16, #tpu.memory_space<vmem>>, vector<1x8x4xbf16>
    %32 = vector.shape_cast %31 : vector<1x8x4xbf16> to vector<8x4xbf16>
    %c0_30 = arith.constant 0 : index
    %c0_31 = arith.constant 0 : index
    %c20 = arith.constant 20 : index
    %33 = vector.load %arg1[%c0_30, %c0_31, %c20] : memref<1x4x364xbf16, #tpu.memory_space<vmem>>, vector<1x4x326xbf16>
    %34 = vector.shape_cast %33 : vector<1x4x326xbf16> to vector<4x326xbf16>
    %cst_32 = arith.constant dense<0.000000e+00> : vector<8x326xf32>
    %35 = tpu.matmul %32, %34, %cst_32 {dimension_numbers = #tpu.dot_dimension_numbers<[1], [0], [0], [1], [0, 0, 1, 1], [], []>} : vector<8x4xbf16>, vector<4x326xbf16>, vector<8x326xf32> -> vector<8x326xf32>
    %36 = arith.addf %30, %35 : vector<8x326xf32>
    %c6 = arith.constant 6 : index
    %c0_33 = arith.constant 0 : index
    %c0_34 = arith.constant 0 : index
    %37 = vector.load %arg2[%c6, %c0_33, %c0_34] : memref<9x8x4xbf16, #tpu.memory_space<vmem>>, vector<1x8x4xbf16>
    %38 = vector.shape_cast %37 : vector<1x8x4xbf16> to vector<8x4xbf16>
    %c0_35 = arith.constant 0 : index
    %c0_36 = arith.constant 0 : index
    %c36 = arith.constant 36 : index
    %39 = vector.load %arg1[%c0_35, %c0_36, %c36] : memref<1x4x364xbf16, #tpu.memory_space<vmem>>, vector<1x4x326xbf16>
    %40 = vector.shape_cast %39 : vector<1x4x326xbf16> to vector<4x326xbf16>
    %cst_37 = arith.constant dense<0.000000e+00> : vector<8x326xf32>
    %41 = tpu.matmul %38, %40, %cst_37 {dimension_numbers = #tpu.dot_dimension_numbers<[1], [0], [0], [1], [0, 0, 1, 1], [], []>} : vector<8x4xbf16>, vector<4x326xbf16>, vector<8x326xf32> -> vector<8x326xf32>
    %42 = arith.addf %36, %41 : vector<8x326xf32>
    %c7 = arith.constant 7 : index
    %c0_38 = arith.constant 0 : index
    %c0_39 = arith.constant 0 : index
    %43 = vector.load %arg2[%c7, %c0_38, %c0_39] : memref<9x8x4xbf16, #tpu.memory_space<vmem>>, vector<1x8x4xbf16>
    %44 = vector.shape_cast %43 : vector<1x8x4xbf16> to vector<8x4xbf16>
    %c0_40 = arith.constant 0 : index
    %c0_41 = arith.constant 0 : index
    %c37 = arith.constant 37 : index
    %45 = vector.load %arg1[%c0_40, %c0_41, %c37] : memref<1x4x364xbf16, #tpu.memory_space<vmem>>, vector<1x4x326xbf16>
    %46 = vector.shape_cast %45 : vector<1x4x326xbf16> to vector<4x326xbf16>
    %cst_42 = arith.constant dense<0.000000e+00> : vector<8x326xf32>
    %47 = tpu.matmul %44, %46, %cst_42 {dimension_numbers = #tpu.dot_dimension_numbers<[1], [0], [0], [1], [0, 0, 1, 1], [], []>} : vector<8x4xbf16>, vector<4x326xbf16>, vector<8x326xf32> -> vector<8x326xf32>
    %48 = arith.addf %42, %47 : vector<8x326xf32>
    %c8 = arith.constant 8 : index
    %c0_43 = arith.constant 0 : index
    %c0_44 = arith.constant 0 : index
    %49 = vector.load %arg2[%c8, %c0_43, %c0_44] : memref<9x8x4xbf16, #tpu.memory_space<vmem>>, vector<1x8x4xbf16>
    %50 = vector.shape_cast %49 : vector<1x8x4xbf16> to vector<8x4xbf16>
    %c0_45 = arith.constant 0 : index
    %c0_46 = arith.constant 0 : index
    %c38 = arith.constant 38 : index
    %51 = vector.load %arg1[%c0_45, %c0_46, %c38] : memref<1x4x364xbf16, #tpu.memory_space<vmem>>, vector<1x4x326xbf16>
    %52 = vector.shape_cast %51 : vector<1x4x326xbf16> to vector<4x326xbf16>
    %cst_47 = arith.constant dense<0.000000e+00> : vector<8x326xf32>
    %53 = tpu.matmul %50, %52, %cst_47 {dimension_numbers = #tpu.dot_dimension_numbers<[1], [0], [0], [1], [0, 0, 1, 1], [], []>} : vector<8x4xbf16>, vector<4x326xbf16>, vector<8x326xf32> -> vector<8x326xf32>
    %54 = arith.addf %48, %53 : vector<8x326xf32>
    %c0_48 = arith.constant 0 : index
    %c0_49 = arith.constant 0 : index
    %55 = vector.load %arg3[%c0_48, %c0_49] : memref<8x1xf32, #tpu.memory_space<vmem>>, vector<8x1xf32>
    %56 = vector.broadcast %55 : vector<8x1xf32> to vector<8x326xf32>
    %57 = arith.addf %54, %56 : vector<8x326xf32>
    %cst_50 = arith.constant 0.000000e+00 : f32
    %58 = vector.broadcast %cst_50 : f32 to vector<8x326xf32>
    %59 = arith.maximumf %57, %58 : vector<8x326xf32>
    %c0_51 = arith.constant 0 : index
    %c0_52 = arith.constant 0 : index
    %60 = vector.load %arg8[%c0_51, %c0_52] : memref<1x326xf32, #tpu.memory_space<vmem>>, vector<1x326xf32>
    %61 = vector.broadcast %60 : vector<1x326xf32> to vector<8x326xf32>
    %62 = arith.mulf %59, %61 : vector<8x326xf32>
    %63 = arith.truncf %62 : vector<8x326xf32> to vector<8x326xbf16>
    %c0_53 = arith.constant 0 : index
    %c0_54 = arith.constant 0 : index
    %64 = vector.load %arg10[%c0_53, %c0_54] : memref<8x326xbf16, #tpu.memory_space<vmem>>, vector<8x326xbf16>
    tpu.vector_store %arg10[%c0_53, %c0_54], %63 {strides = array<i32>} : memref<8x326xbf16, #tpu.memory_space<vmem>>, vector<8x326xbf16>,
    %cst_55 = arith.constant 0.000000e+00 : f32
    %65 = vector.broadcast %cst_55 : f32 to vector<8x288xf32>
    %c0_56 = arith.constant 0 : index
    %c0_57 = arith.constant 0 : index
    %c0_58 = arith.constant 0 : index
    %66 = vector.load %arg4[%c0_56, %c0_57, %c0_58] : memref<9x8x8xbf16, #tpu.memory_space<vmem>>, vector<1x8x8xbf16>
    %67 = vector.shape_cast %66 : vector<1x8x8xbf16> to vector<8x8xbf16>
    %c0_59 = arith.constant 0 : index
    %c0_60 = arith.constant 0 : index
    %68 = vector.load %arg10[%c0_59, %c0_60] : memref<8x326xbf16, #tpu.memory_space<vmem>>, vector<8x288xbf16>
    %cst_61 = arith.constant dense<0.000000e+00> : vector<8x288xf32>
    %69 = tpu.matmul %67, %68, %cst_61 {dimension_numbers = #tpu.dot_dimension_numbers<[1], [0], [0], [1], [0, 0, 1, 1], [], []>} : vector<8x8xbf16>, vector<8x288xbf16>, vector<8x288xf32> -> vector<8x288xf32>
    %70 = arith.addf %65, %69 : vector<8x288xf32>
    %c1_62 = arith.constant 1 : index
    %c0_63 = arith.constant 0 : index
    %c0_64 = arith.constant 0 : index
    %71 = vector.load %arg4[%c1_62, %c0_63, %c0_64] : memref<9x8x8xbf16, #tpu.memory_space<vmem>>, vector<1x8x8xbf16>
    %72 = vector.shape_cast %71 : vector<1x8x8xbf16> to vector<8x8xbf16>
    %c0_65 = arith.constant 0 : index
    %c1_66 = arith.constant 1 : index
    %73 = vector.load %arg10[%c0_65, %c1_66] : memref<8x326xbf16, #tpu.memory_space<vmem>>, vector<8x288xbf16>
    %cst_67 = arith.constant dense<0.000000e+00> : vector<8x288xf32>
    %74 = tpu.matmul %72, %73, %cst_67 {dimension_numbers = #tpu.dot_dimension_numbers<[1], [0], [0], [1], [0, 0, 1, 1], [], []>} : vector<8x8xbf16>, vector<8x288xbf16>, vector<8x288xf32> -> vector<8x288xf32>
    %75 = arith.addf %70, %74 : vector<8x288xf32>
    %c2_68 = arith.constant 2 : index
    %c0_69 = arith.constant 0 : index
    %c0_70 = arith.constant 0 : index
    %76 = vector.load %arg4[%c2_68, %c0_69, %c0_70] : memref<9x8x8xbf16, #tpu.memory_space<vmem>>, vector<1x8x8xbf16>
    %77 = vector.shape_cast %76 : vector<1x8x8xbf16> to vector<8x8xbf16>
    %c0_71 = arith.constant 0 : index
    %c2_72 = arith.constant 2 : index
    %78 = vector.load %arg10[%c0_71, %c2_72] : memref<8x326xbf16, #tpu.memory_space<vmem>>, vector<8x288xbf16>
    %cst_73 = arith.constant dense<0.000000e+00> : vector<8x288xf32>
    %79 = tpu.matmul %77, %78, %cst_73 {dimension_numbers = #tpu.dot_dimension_numbers<[1], [0], [0], [1], [0, 0, 1, 1], [], []>} : vector<8x8xbf16>, vector<8x288xbf16>, vector<8x288xf32> -> vector<8x288xf32>
    %80 = arith.addf %75, %79 : vector<8x288xf32>
    %c3_74 = arith.constant 3 : index
    %c0_75 = arith.constant 0 : index
    %c0_76 = arith.constant 0 : index
    %81 = vector.load %arg4[%c3_74, %c0_75, %c0_76] : memref<9x8x8xbf16, #tpu.memory_space<vmem>>, vector<1x8x8xbf16>
    %82 = vector.shape_cast %81 : vector<1x8x8xbf16> to vector<8x8xbf16>
    %c0_77 = arith.constant 0 : index
    %c18_78 = arith.constant 18 : index
    %83 = vector.load %arg10[%c0_77, %c18_78] : memref<8x326xbf16, #tpu.memory_space<vmem>>, vector<8x288xbf16>
    %cst_79 = arith.constant dense<0.000000e+00> : vector<8x288xf32>
    %84 = tpu.matmul %82, %83, %cst_79 {dimension_numbers = #tpu.dot_dimension_numbers<[1], [0], [0], [1], [0, 0, 1, 1], [], []>} : vector<8x8xbf16>, vector<8x288xbf16>, vector<8x288xf32> -> vector<8x288xf32>
    %85 = arith.addf %80, %84 : vector<8x288xf32>
    %c4_80 = arith.constant 4 : index
    %c0_81 = arith.constant 0 : index
    %c0_82 = arith.constant 0 : index
    %86 = vector.load %arg4[%c4_80, %c0_81, %c0_82] : memref<9x8x8xbf16, #tpu.memory_space<vmem>>, vector<1x8x8xbf16>
    %87 = vector.shape_cast %86 : vector<1x8x8xbf16> to vector<8x8xbf16>
    %c0_83 = arith.constant 0 : index
    %c19_84 = arith.constant 19 : index
    %88 = vector.load %arg10[%c0_83, %c19_84] : memref<8x326xbf16, #tpu.memory_space<vmem>>, vector<8x288xbf16>
    %cst_85 = arith.constant dense<0.000000e+00> : vector<8x288xf32>
    %89 = tpu.matmul %87, %88, %cst_85 {dimension_numbers = #tpu.dot_dimension_numbers<[1], [0], [0], [1], [0, 0, 1, 1], [], []>} : vector<8x8xbf16>, vector<8x288xbf16>, vector<8x288xf32> -> vector<8x288xf32>
    %90 = arith.addf %85, %89 : vector<8x288xf32>
    %c5_86 = arith.constant 5 : index
    %c0_87 = arith.constant 0 : index
    %c0_88 = arith.constant 0 : index
    %91 = vector.load %arg4[%c5_86, %c0_87, %c0_88] : memref<9x8x8xbf16, #tpu.memory_space<vmem>>, vector<1x8x8xbf16>
    %92 = vector.shape_cast %91 : vector<1x8x8xbf16> to vector<8x8xbf16>
    %c0_89 = arith.constant 0 : index
    %c20_90 = arith.constant 20 : index
    %93 = vector.load %arg10[%c0_89, %c20_90] : memref<8x326xbf16, #tpu.memory_space<vmem>>, vector<8x288xbf16>
    %cst_91 = arith.constant dense<0.000000e+00> : vector<8x288xf32>
    %94 = tpu.matmul %92, %93, %cst_91 {dimension_numbers = #tpu.dot_dimension_numbers<[1], [0], [0], [1], [0, 0, 1, 1], [], []>} : vector<8x8xbf16>, vector<8x288xbf16>, vector<8x288xf32> -> vector<8x288xf32>
    %95 = arith.addf %90, %94 : vector<8x288xf32>
    %c6_92 = arith.constant 6 : index
    %c0_93 = arith.constant 0 : index
    %c0_94 = arith.constant 0 : index
    %96 = vector.load %arg4[%c6_92, %c0_93, %c0_94] : memref<9x8x8xbf16, #tpu.memory_space<vmem>>, vector<1x8x8xbf16>
    %97 = vector.shape_cast %96 : vector<1x8x8xbf16> to vector<8x8xbf16>
    %c0_95 = arith.constant 0 : index
    %c36_96 = arith.constant 36 : index
    %98 = vector.load %arg10[%c0_95, %c36_96] : memref<8x326xbf16, #tpu.memory_space<vmem>>, vector<8x288xbf16>
    %cst_97 = arith.constant dense<0.000000e+00> : vector<8x288xf32>
    %99 = tpu.matmul %97, %98, %cst_97 {dimension_numbers = #tpu.dot_dimension_numbers<[1], [0], [0], [1], [0, 0, 1, 1], [], []>} : vector<8x8xbf16>, vector<8x288xbf16>, vector<8x288xf32> -> vector<8x288xf32>
    %100 = arith.addf %95, %99 : vector<8x288xf32>
    %c7_98 = arith.constant 7 : index
    %c0_99 = arith.constant 0 : index
    %c0_100 = arith.constant 0 : index
    %101 = vector.load %arg4[%c7_98, %c0_99, %c0_100] : memref<9x8x8xbf16, #tpu.memory_space<vmem>>, vector<1x8x8xbf16>
    %102 = vector.shape_cast %101 : vector<1x8x8xbf16> to vector<8x8xbf16>
    %c0_101 = arith.constant 0 : index
    %c37_102 = arith.constant 37 : index
    %103 = vector.load %arg10[%c0_101, %c37_102] : memref<8x326xbf16, #tpu.memory_space<vmem>>, vector<8x288xbf16>
    %cst_103 = arith.constant dense<0.000000e+00> : vector<8x288xf32>
    %104 = tpu.matmul %102, %103, %cst_103 {dimension_numbers = #tpu.dot_dimension_numbers<[1], [0], [0], [1], [0, 0, 1, 1], [], []>} : vector<8x8xbf16>, vector<8x288xbf16>, vector<8x288xf32> -> vector<8x288xf32>
    %105 = arith.addf %100, %104 : vector<8x288xf32>
    %c8_104 = arith.constant 8 : index
    %c0_105 = arith.constant 0 : index
    %c0_106 = arith.constant 0 : index
    %106 = vector.load %arg4[%c8_104, %c0_105, %c0_106] : memref<9x8x8xbf16, #tpu.memory_space<vmem>>, vector<1x8x8xbf16>
    %107 = vector.shape_cast %106 : vector<1x8x8xbf16> to vector<8x8xbf16>
    %c0_107 = arith.constant 0 : index
    %c38_108 = arith.constant 38 : index
    %108 = vector.load %arg10[%c0_107, %c38_108] : memref<8x326xbf16, #tpu.memory_space<vmem>>, vector<8x288xbf16>
    %cst_109 = arith.constant dense<0.000000e+00> : vector<8x288xf32>
    %109 = tpu.matmul %107, %108, %cst_109 {dimension_numbers = #tpu.dot_dimension_numbers<[1], [0], [0], [1], [0, 0, 1, 1], [], []>} : vector<8x8xbf16>, vector<8x288xbf16>, vector<8x288xf32> -> vector<8x288xf32>
    %110 = arith.addf %105, %109 : vector<8x288xf32>
    %c0_110 = arith.constant 0 : index
    %c0_111 = arith.constant 0 : index
    %111 = vector.load %arg5[%c0_110, %c0_111] : memref<8x1xf32, #tpu.memory_space<vmem>>, vector<8x1xf32>
    %112 = vector.broadcast %111 : vector<8x1xf32> to vector<8x288xf32>
    %113 = arith.addf %110, %112 : vector<8x288xf32>
    %cst_112 = arith.constant 0.000000e+00 : f32
    %114 = vector.broadcast %cst_112 : f32 to vector<8x288xf32>
    %115 = arith.maximumf %113, %114 : vector<8x288xf32>
    %c0_113 = arith.constant 0 : index
    %c0_114 = arith.constant 0 : index
    %116 = vector.load %arg6[%c0_113, %c0_114] : memref<8x4xbf16, #tpu.memory_space<vmem>>, vector<8x4xbf16>
    %c0_115 = arith.constant 0 : index
    %c0_116 = arith.constant 0 : index
    %c38_117 = arith.constant 38 : index
    %117 = vector.load %arg1[%c0_115, %c0_116, %c38_117] : memref<1x4x364xbf16, #tpu.memory_space<vmem>>, vector<1x4x288xbf16>
    %118 = vector.shape_cast %117 : vector<1x4x288xbf16> to vector<4x288xbf16>
    %cst_118 = arith.constant dense<0.000000e+00> : vector<8x288xf32>
    %119 = tpu.matmul %116, %118, %cst_118 {dimension_numbers = #tpu.dot_dimension_numbers<[1], [0], [0], [1], [0, 0, 1, 1], [], []>} : vector<8x4xbf16>, vector<4x288xbf16>, vector<8x288xf32> -> vector<8x288xf32>
    %c0_119 = arith.constant 0 : index
    %c0_120 = arith.constant 0 : index
    %120 = vector.load %arg7[%c0_119, %c0_120] : memref<8x1xf32, #tpu.memory_space<vmem>>, vector<8x1xf32>
    %121 = vector.broadcast %120 : vector<8x1xf32> to vector<8x288xf32>
    %122 = arith.addf %119, %121 : vector<8x288xf32>
    %123 = arith.addf %115, %122 : vector<8x288xf32>
    %cst_121 = arith.constant 0.000000e+00 : f32
    %124 = vector.broadcast %cst_121 : f32 to vector<8x288xf32>
    %125 = arith.maximumf %123, %124 : vector<8x288xf32>
    %c0_122 = arith.constant 0 : index
    %c0_123 = arith.constant 0 : index
    %c0_124 = arith.constant 0 : index
    %126 = vector.load %arg9[%c0_122, %c0_123, %c0_124] : memref<1x8x288xf32, #tpu.memory_space<vmem>>, vector<1x8x288xf32>
    %127 = vector.shape_cast %126 : vector<1x8x288xf32> to vector<8x288xf32>
    %128 = vector.shape_cast %125 : vector<8x288xf32> to vector<1x8x288xf32>
    tpu.vector_store %arg9[%c0_122, %c0_123, %c0_124], %128 {strides = array<i32>} : memref<1x8x288xf32, #tpu.memory_space<vmem>>, vector<1x8x288xf32>,
    return
  }
  func.func @transform_0(%arg0: i32) -> (i32, i32, i32) {
    %c0_i32 = arith.constant 0 : i32
    %c0_i32_0 = arith.constant 0 : i32
    %c0_i32_1 = arith.constant 0 : i32
    return %arg0, %c0_i32, %c0_i32_0 : i32, i32, i32
  }
  func.func @transform_1(%arg0: i32) -> (i32, i32, i32) {
    %c0_i32 = arith.constant 0 : i32
    %c0_i32_0 = arith.constant 0 : i32
    %c0_i32_1 = arith.constant 0 : i32
    %c0_i32_2 = arith.constant 0 : i32
    return %c0_i32, %c0_i32_0, %c0_i32_1 : i32, i32, i32
  }
  func.func @transform_2(%arg0: i32) -> (i32, i32) {
    %c0_i32 = arith.constant 0 : i32
    %c0_i32_0 = arith.constant 0 : i32
    %c0_i32_1 = arith.constant 0 : i32
    return %c0_i32, %c0_i32_0 : i32, i32
  }
  func.func @transform_3(%arg0: i32) -> (i32, i32, i32) {
    %c0_i32 = arith.constant 0 : i32
    %c0_i32_0 = arith.constant 0 : i32
    %c0_i32_1 = arith.constant 0 : i32
    %c0_i32_2 = arith.constant 0 : i32
    return %c0_i32, %c0_i32_0, %c0_i32_1 : i32, i32, i32
  }
  func.func @transform_4(%arg0: i32) -> (i32, i32) {
    %c0_i32 = arith.constant 0 : i32
    %c0_i32_0 = arith.constant 0 : i32
    %c0_i32_1 = arith.constant 0 : i32
    return %c0_i32, %c0_i32_0 : i32, i32
  }
  func.func @transform_5(%arg0: i32) -> (i32, i32) {
    %c0_i32 = arith.constant 0 : i32
    %c0_i32_0 = arith.constant 0 : i32
    %c0_i32_1 = arith.constant 0 : i32
    return %c0_i32, %c0_i32_0 : i32, i32
  }
  func.func @transform_6(%arg0: i32) -> (i32, i32) {
    %c0_i32 = arith.constant 0 : i32
    %c0_i32_0 = arith.constant 0 : i32
    %c0_i32_1 = arith.constant 0 : i32
    return %c0_i32, %c0_i32_0 : i32, i32
  }
  func.func @transform_7(%arg0: i32) -> (i32, i32) {
    %c0_i32 = arith.constant 0 : i32
    %c0_i32_0 = arith.constant 0 : i32
    %c0_i32_1 = arith.constant 0 : i32
    return %c0_i32, %c0_i32_0 : i32, i32
  }
  func.func @transform_8(%arg0: i32) -> (i32, i32, i32) {
    %c0_i32 = arith.constant 0 : i32
    %c0_i32_0 = arith.constant 0 : i32
    %c0_i32_1 = arith.constant 0 : i32
    return %arg0, %c0_i32, %c0_i32_0 : i32, i32, i32
  }
}

</mosaic_0001>

<llo_original>
// kernel: res_encoder_forward.1
$region0: #{res_encoder_forward.1}
  #allocation0 [shape = 'u32[]', space=smem, size = 0x4, offset = 0x4, fixed_abs, tag = 'smem constant byte address 0x4 - core index']
  #allocation1 [shape = 'u32[144,128]{1,0:T(1,128)}', space=vmem, size = 0x12000, scoped, tag = 'internal scratch']
  #allocation2 [shape = 'bf16[8,326]{1,0:T(8,128)(2,1)}', space=vmem, size = 0x1800, scoped, tag = 'scratch operand']
  %s0 = inlined_call_operand.vmem [shape: bf16[2,4,364], index: 0, kind: input, shape index: {}]
  %s1 = inlined_call_operand.vmem [shape: bf16[9,8,4], index: 1, kind: input, shape index: {}]
  %s2 = inlined_call_operand.vmem [shape: f32[8,1], index: 2, kind: input, shape index: {}]
  %s3 = inlined_call_operand.vmem [shape: bf16[9,8,8], index: 3, kind: input, shape index: {}]
  %s4 = inlined_call_operand.vmem [shape: f32[8,1], index: 4, kind: input, shape index: {}]
  %s5 = inlined_call_operand.vmem [shape: bf16[8,4], index: 5, kind: input, shape index: {}]
  %s6 = inlined_call_operand.vmem [shape: f32[8,1], index: 6, kind: input, shape index: {}]
  %s7 = inlined_call_operand.vmem [shape: f32[1,326], index: 7, kind: input, shape index: {}]
  %s8 = inlined_call_operand.vmem [shape: f32[2,8,288], index: 8, kind: output, shape index: {}]
  %s9 = sld [smem:[#allocation0]]
  $region65: #{res_encoder_forward.1} parent=0
    _
  %s11 = ssub.s32 1, %s9
  %s12 = scalar_select 0, %s11, %s9
  loop: start=0, step=1, limit=4
  $region2: #{res_encoder_forward.1} parent=0 // loop_pre_header
    _
  $region3: #{res_encoder_forward.1} parent=0 // loop_header
    %s14 = sphi 0, %s18
    %p15 = scmp.ge.s32.totalorder %s14, 4
    %s24 = sphi 0, %s26
    %s27 = sphi 0, %s24
    %s28 = sphi 0, %s27
    %s44 = sphi 0, %s28
    %s48 = sphi 0, %s48
    %s50 = sphi 0, %s48
    %s51 = sphi 0, %s50
    %s65 = sphi 0, %s51
    %s69 = sphi 0, %s69
    %s71 = sphi 0, %s69
    %s72 = sphi 0, %s71
    %s86 = sphi 0, %s72
    %s90 = sphi 0, %s90
    %s92 = sphi 0, %s90
    %s93 = sphi 0, %s92
    %s107 = sphi 0, %s93
    %s111 = sphi 0, %s111
    %s113 = sphi 0, %s111
    %s114 = sphi 0, %s113
    %s128 = sphi 0, %s114
    %s132 = sphi 0, %s132
    %s134 = sphi 0, %s132
    %s135 = sphi 0, %s134
    %s149 = sphi 0, %s135
    %s153 = sphi 0, %s153
    %s155 = sphi 0, %s153
    %s156 = sphi 0, %s155
    %s170 = sphi 0, %s156
    %s174 = sphi 0, %s174
    %s176 = sphi 0, %s174
    %s177 = sphi 0, %s176
    %s191 = sphi 0, %s177
    %s197 = sphi 0, %s199
    %s200 = sphi 0, %s197
    %s201 = sphi 0, %s200
    %s217 = sphi 0, %s201
  $region4: #{res_encoder_forward.1} parent=0 // loop_header_branch
    %17 = sbr.rel (%p15) target = $region8
  $region5: #{res_encoder_forward.1} parent=0 // loop_body
    %s19 = ssub.s32 %s14, 1
    %s20 = ssub.s32 %s14, 2
    %s21 = sadd.s32 %s14, 1
    %s22 = ssub.s32 %s14, %s21
    %p23 = scmp.eq.s32.totalorder %s22, 0
    %s25 = sadd.s32 %s24, 1
    %s26 = scalar_select %p23, %s24, %s25
    %p29 = pneg %p23
    %p30 = scmp.eq.s32.totalorder %s14, 1
    %p31 = por %p29, %p30
    %p32 = scmp.ne.s32.totalorder %s24, %s27
    %p33 = scmp.eq.s32.totalorder %s14, 0
    %p34 = por %p32, %p33
    %p35 = scmp.ne.s32.totalorder %s24, %s27
    %p36 = scmp.eq.s32.totalorder %s19, 1
    %p37 = por %p35, %p36
    %p38 = scmp.ne.s32.totalorder %s27, %s28
    %p39 = scmp.eq.s32.totalorder %s19, 0
    %p40 = por %p38, %p39
    %p41 = scmp.ne.s32.totalorder %s27, %s28
    %p42 = scmp.eq.s32.totalorder %s20, 1
    %p43 = por %p41, %p42
    %p45 = scmp.ne.s32.totalorder %s28, %s44
    %p46 = scmp.eq.s32.totalorder %s20, 0
    %p47 = por %p45, %p46
    %s49 = sadd.s32 %s48, 1
    %p52 = scmp.eq.s32.totalorder %s14, 1
    %p53 = scmp.ne.s32.totalorder %s48, %s50
    %p54 = scmp.eq.s32.totalorder %s14, 0
    %p55 = por %p53, %p54
    %p56 = scmp.ne.s32.totalorder %s48, %s50
    %p57 = scmp.eq.s32.totalorder %s19, 1
    %p58 = por %p56, %p57
    %p59 = scmp.ne.s32.totalorder %s50, %s51
    %p60 = scmp.eq.s32.totalorder %s19, 0
    %p61 = por %p59, %p60
    %p62 = scmp.ne.s32.totalorder %s50, %s51
    %p63 = scmp.eq.s32.totalorder %s20, 1
    %p64 = por %p62, %p63
    %p66 = scmp.ne.s32.totalorder %s51, %s65
    %p67 = scmp.eq.s32.totalorder %s20, 0
    %p68 = por %p66, %p67
    %s70 = sadd.s32 %s69, 1
    %p73 = scmp.eq.s32.totalorder %s14, 1
    %p74 = scmp.ne.s32.totalorder %s69, %s71
    %p75 = scmp.eq.s32.totalorder %s14, 0
    %p76 = por %p74, %p75
    %p77 = scmp.ne.s32.totalorder %s69, %s71
    %p78 = scmp.eq.s32.totalorder %s19, 1
    %p79 = por %p77, %p78
    %p80 = scmp.ne.s32.totalorder %s71, %s72
    %p81 = scmp.eq.s32.totalorder %s19, 0
    %p82 = por %p80, %p81
    %p83 = scmp.ne.s32.totalorder %s71, %s72
    %p84 = scmp.eq.s32.totalorder %s20, 1
    %p85 = por %p83, %p84
    %p87 = scmp.ne.s32.totalorder %s72, %s86
    %p88 = scmp.eq.s32.totalorder %s20, 0
    %p89 = por %p87, %p88
    %s91 = sadd.s32 %s90, 1
    %p94 = scmp.eq.s32.totalorder %s14, 1
    %p95 = scmp.ne.s32.totalorder %s90, %s92
    %p96 = scmp.eq.s32.totalorder %s14, 0
    %p97 = por %p95, %p96
    %p98 = scmp.ne.s32.totalorder %s90, %s92
    %p99 = scmp.eq.s32.totalorder %s19, 1
    %p100 = por %p98, %p99
    %p101 = scmp.ne.s32.totalorder %s92, %s93
    %p102 = scmp.eq.s32.totalorder %s19, 0
    %p103 = por %p101, %p102
    %p104 = scmp.ne.s32.totalorder %s92, %s93
    %p105 = scmp.eq.s32.totalorder %s20, 1
    %p106 = por %p104, %p105
    %p108 = scmp.ne.s32.totalorder %s93, %s107
    %p109 = scmp.eq.s32.totalorder %s20, 0
    %p110 = por %p108, %p109
    %s112 = sadd.s32 %s111, 1
    %p115 = scmp.eq.s32.totalorder %s14, 1
    %p116 = scmp.ne.s32.totalorder %s111, %s113
    %p117 = scmp.eq.s32.totalorder %s14, 0
    %p118 = por %p116, %p117
    %p119 = scmp.ne.s32.totalorder %s111, %s113
    %p120 = scmp.eq.s32.totalorder %s19, 1
    %p121 = por %p119, %p120
    %p122 = scmp.ne.s32.totalorder %s113, %s114
    %p123 = scmp.eq.s32.totalorder %s19, 0
    %p124 = por %p122, %p123
    %p125 = scmp.ne.s32.totalorder %s113, %s114
    %p126 = scmp.eq.s32.totalorder %s20, 1
    %p127 = por %p125, %p126
    %p129 = scmp.ne.s32.totalorder %s114, %s128
    %p130 = scmp.eq.s32.totalorder %s20, 0
    %p131 = por %p129, %p130
    %s133 = sadd.s32 %s132, 1
    %p136 = scmp.eq.s32.totalorder %s14, 1
    %p137 = scmp.ne.s32.totalorder %s132, %s134
    %p138 = scmp.eq.s32.totalorder %s14, 0
    %p139 = por %p137, %p138
    %p140 = scmp.ne.s32.totalorder %s132, %s134
    %p141 = scmp.eq.s32.totalorder %s19, 1
    %p142 = por %p140, %p141
    %p143 = scmp.ne.s32.totalorder %s134, %s135
    %p144 = scmp.eq.s32.totalorder %s19, 0
    %p145 = por %p143, %p144
    %p146 = scmp.ne.s32.totalorder %s134, %s135
    %p147 = scmp.eq.s32.totalorder %s20, 1
    %p148 = por %p146, %p147
    %p150 = scmp.ne.s32.totalorder %s135, %s149
    %p151 = scmp.eq.s32.totalorder %s20, 0
    %p152 = por %p150, %p151
    %s154 = sadd.s32 %s153, 1
    %p157 = scmp.eq.s32.totalorder %s14, 1
    %p158 = scmp.ne.s32.totalorder %s153, %s155
    %p159 = scmp.eq.s32.totalorder %s14, 0
    %p160 = por %p158, %p159
    %p161 = scmp.ne.s32.totalorder %s153, %s155
    %p162 = scmp.eq.s32.totalorder %s19, 1
    %p163 = por %p161, %p162
    %p164 = scmp.ne.s32.totalorder %s155, %s156
    %p165 = scmp.eq.s32.totalorder %s19, 0
    %p166 = por %p164, %p165
    %p167 = scmp.ne.s32.totalorder %s155, %s156
    %p168 = scmp.eq.s32.totalorder %s20, 1
    %p169 = por %p167, %p168
    %p171 = scmp.ne.s32.totalorder %s156, %s170
    %p172 = scmp.eq.s32.totalorder %s20, 0
    %p173 = por %p171, %p172
    %s175 = sadd.s32 %s174, 1
    %p178 = scmp.eq.s32.totalorder %s14, 1
    %p179 = scmp.ne.s32.totalorder %s174, %s176
    %p180 = scmp.eq.s32.totalorder %s14, 0
    %p181 = por %p179, %p180
    %p182 = scmp.ne.s32.totalorder %s174, %s176
    %p183 = scmp.eq.s32.totalorder %s19, 1
    %p184 = por %p182, %p183
    %p185 = scmp.ne.s32.totalorder %s176, %s177
    %p186 = scmp.eq.s32.totalorder %s19, 0
    %p187 = por %p185, %p186
    %p188 = scmp.ne.s32.totalorder %s176, %s177
    %p189 = scmp.eq.s32.totalorder %s20, 1
    %p190 = por %p188, %p189
    %p192 = scmp.ne.s32.totalorder %s177, %s191
    %p193 = scmp.eq.s32.totalorder %s20, 0
    %p194 = por %p192, %p193
    %s195 = ssub.s32 %s14, %s21
    %p196 = scmp.eq.s32.totalorder %s195, 0
    %s198 = sadd.s32 %s197, 1
    %s199 = scalar_select %p196, %s197, %s198
    %p202 = pneg %p196
    %p203 = scmp.eq.s32.totalorder %s14, 1
    %p204 = por %p202, %p203
    %p205 = scmp.ne.s32.totalorder %s197, %s200
    %p206 = scmp.eq.s32.totalorder %s14, 0
    %p207 = por %p205, %p206
    %p208 = scmp.ne.s32.totalorder %s197, %s200
    %p209 = scmp.eq.s32.totalorder %s19, 1
    %p210 = por %p208, %p209
    %p211 = scmp.ne.s32.totalorder %s200, %s201
    %p212 = scmp.eq.s32.totalorder %s19, 0
    %p213 = por %p211, %p212
    %p214 = scmp.ne.s32.totalorder %s200, %s201
    %p215 = scmp.eq.s32.totalorder %s20, 1
    %p216 = por %p214, %p215
    %p218 = scmp.ne.s32.totalorder %s201, %s217
    %p219 = scmp.eq.s32.totalorder %s20, 0
    %p220 = por %p218, %p219
    %p221 = scmp.le.s32.totalorder 1, %s14
    %p222 = scmp.lt.s32.totalorder %s14, 3
    %p223 = pnand %p221, %p222
    %p224 = pneg %p223
    // Predicated region
    $region9: #{res_encoder_forward.1} parent=5 // pred_check
      _
    $region10: #{res_encoder_forward.1} parent=5 // pred_check_branch
      %226 = sbr.rel (%p223) target = $region12
    $region11: #{res_encoder_forward.1} parent=5 // pred_region
      %s227 = ssub.s32 %s14, 1
      // Predicated region
      $region13: #{res_encoder_forward.1} parent=11 // pred_check
        %p228 = pneg %p61
      $region14: #{res_encoder_forward.1} parent=11 // pred_check_branch
        %230 = sbr.rel (%p228) target = $region16
      $region15: #{res_encoder_forward.1} parent=11 // pred_region
        _
      $region16: #{res_encoder_forward.1} parent=11 // pred_fallthru
        _
      // Predicated region
      $region17: #{res_encoder_forward.1} parent=11 // pred_check
        %p231 = pneg %p82
      $region18: #{res_encoder_forward.1} parent=11 // pred_check_branch
        %233 = sbr.rel (%p231) target = $region20
      $region19: #{res_encoder_forward.1} parent=11 // pred_region
        _
      $region20: #{res_encoder_forward.1} parent=11 // pred_fallthru
        _
      // Predicated region
      $region21: #{res_encoder_forward.1} parent=11 // pred_check
        %p234 = pneg %p103
      $region22: #{res_encoder_forward.1} parent=11 // pred_check_branch
        %236 = sbr.rel (%p234) target = $region24
      $region23: #{res_encoder_forward.1} parent=11 // pred_region
        _
      $region24: #{res_encoder_forward.1} parent=11 // pred_fallthru
        _
      // Predicated region
      $region25: #{res_encoder_forward.1} parent=11 // pred_check
        %p237 = pneg %p124
      $region26: #{res_encoder_forward.1} parent=11 // pred_check_branch
        %239 = sbr.rel (%p237) target = $region28
      $region27: #{res_encoder_forward.1} parent=11 // pred_region
        _
      $region28: #{res_encoder_forward.1} parent=11 // pred_fallthru
        _
      // Predicated region
      $region29: #{res_encoder_forward.1} parent=11 // pred_check
        %p240 = pneg %p145
      $region30: #{res_encoder_forward.1} parent=11 // pred_check_branch
        %242 = sbr.rel (%p240) target = $region32
      $region31: #{res_encoder_forward.1} parent=11 // pred_region
        _
      $region32: #{res_encoder_forward.1} parent=11 // pred_fallthru
        _
      // Predicated region
      $region33: #{res_encoder_forward.1} parent=11 // pred_check
        %p243 = pneg %p166
      $region34: #{res_encoder_forward.1} parent=11 // pred_check_branch
        %245 = sbr.rel (%p243) target = $region36
      $region35: #{res_encoder_forward.1} parent=11 // pred_region
        _
      $region36: #{res_encoder_forward.1} parent=11 // pred_fallthru
        _
      // Predicated region
      $region37: #{res_encoder_forward.1} parent=11 // pred_check
        %p246 = pneg %p187
      $region38: #{res_encoder_forward.1} parent=11 // pred_check_branch
        %248 = sbr.rel (%p246) target = $region40
      $region39: #{res_encoder_forward.1} parent=11 // pred_region
        _
      $region40: #{res_encoder_forward.1} parent=11 // pred_fallthru
        _
    $region12: #{res_encoder_forward.1} parent=5 // pred_fallthru
      _
    %p249 = scmp.lt.s32.totalorder %s14, 2
    // Predicated region
    $region41: #{res_encoder_forward.1} parent=5 // pred_check
      %p250 = pneg %p249
    $region42: #{res_encoder_forward.1} parent=5 // pred_check_branch
      %252 = sbr.rel (%p250) target = $region44
    $region43: #{res_encoder_forward.1} parent=5 // pred_region
      // Predicated region
      $region45: #{res_encoder_forward.1} parent=43 // pred_check
        %p253 = pneg %p34
      $region46: #{res_encoder_forward.1} parent=43 // pred_check_branch
        %255 = sbr.rel (%p253) target = $region48
      $region47: #{res_encoder_forward.1} parent=43 // pred_region
        %p256 = scmp.lt.s32.totalorder %s14, 1
        %s257 = scalar_select %p256, %s14, 1
        %s258 = smul.addr %s257, 3
        %s259 = smul.addr %s258, 2
        %s260 = scalar_lea.vmem %s0, %s259
      $region48: #{res_encoder_forward.1} parent=43 // pred_fallthru
        _
    $region44: #{res_encoder_forward.1} parent=5 // pred_fallthru
      _
    %p261 = scmp.le.s32.totalorder 1, %s14
    %p262 = scmp.lt.s32.totalorder %s14, 3
    %p263 = pnand %p261, %p262
    %p264 = pneg %p263
    // Predicated region
    $region49: #{res_encoder_forward.1} parent=5 // pred_check
      _
    $region50: #{res_encoder_forward.1} parent=5 // pred_check_branch
      %266 = sbr.rel (%p263) target = $region52
    $region51: #{res_encoder_forward.1} parent=5 // pred_region
      %s267 = ssub.s32 %s14, 1
      %p268 = scmp.lt.s32.totalorder %s19, 1
      %s269 = scalar_select %p268, %s19, 1
      %s270 = smul.addr %s269, 3
      %s271 = smul.addr %s270, 2
      %s272 = scalar_lea.vmem %s0, %s271
      %p273 = pneg %p40
      %p274 = pneg %p37
      %p275 = pneg %p61
      %p276 = pneg %p58
      %p277 = pneg %p82
      %p278 = pneg %p79
      %p279 = pneg %p103
      %p280 = pneg %p100
      %p281 = pneg %p124
      %p282 = pneg %p121
      %p283 = pneg %p145
      %p284 = pneg %p142
      %p285 = pneg %p166
      %p286 = pneg %p163
      %p287 = pneg %p187
      %p288 = pneg %p184
      %p289 = pneg %p213
      %p290 = pneg %p210
      %p291 = scmp.lt.s32.totalorder %s19, 1
      %s292 = scalar_select %p291, %s19, 1
      %s293 = smul.addr %s292, 3
      %s294 = smul.addr %s293, 8
      %s295 = scalar_lea.vmem %s8, %s294
      %p296 = scmp.lt.s32.totalorder %s19, 1
      %s297 = scalar_select %p296, %s19, 1
      %s298 = smul.addr %s297, 3
      %s299 = smul.addr %s298, 2
      %s300 = scalar_lea.vmem %s0, %s299
      %p301 = scmp.lt.s32.totalorder %s19, 1
      %s302 = scalar_select %p301, %s19, 1
      %s303 = smul.addr %s302, 3
      %s304 = smul.addr %s303, 8
      %s305 = scalar_lea.vmem %s8, %s304
      %v307 = vld [vmem:[%s1] sm:$0xf]
      %v308 = vld [vmem:[%s300] sm:$0x3f]
      %s309 = scalar_lea.vmem %s1, 4
      %v310 = vld [vmem:[%s309] sm:$0xf]
      %v312 = vcombine.high %v308, %v308
      %v314 = vunpack.c.l.s4 1983009808
      %v315 = vunpack.c.0.s8 %v314
      %v316 = vlaneseq
      %v317 = vshrl.u32 %v316, 7
      %v318 = vsub.s32 %v315, %v317
      %v319 = vrot.slane %v308, %v318
      %v321 = vunpack.c.l.s4 1983009808
      %v322 = vunpack.c.0.s8 %v321
      %v323 = vlaneseq
      %v324 = vshrl.u32 %v323, 7
      %v325 = vsub.s32 %v322, %v324
      %v326 = vrot.slane %v312, %v325
      %v327 = vcombine.high %v319, %v319
      %328 = vrot.lane.b32.xlu0 %v319, 127
      %v329 = vpop.permute.xlu0 %328
      %330 = vrot.lane.b32.xlu0 %v327, 127
      %v331 = vpop.permute.xlu0 %330
      %332 = vrot.lane.b32.xlu0 %v326, 127
      %v333 = vpop.permute.xlu0 %332
      %vm334 = vcmask 1039360
      %v335 = vsel %vm334, %v329, %v331
      %v336 = vsel %vm334, %v331, %v333
      %vm337 = vcmask 31744
      %v339 = vsel %vm337, %v310, 0
      %vm341 = vcmask 1041408
      %v343 = vsel %vm341, %v335, 0
      %v346 = vsel %vm341, %v336, 0
      %v349 = vsel %vm341, %v333, 0
      %351 = vmatprep.subr.bf16.mxu0 0
      %352 = vmatpush1.bf16.msra.mxu0 0
      %353 = vmatprep.subr.bf16.mxu0 0
      %354 = vmatpush1.bf16.msra.mxu0 0
      %355 = vmatprep.subr.bf16.mxu0 0
      %356 = vmatpush1.bf16.msra.mxu0 0
      %357 = vmatprep.subr.bf16.mxu0 0
      %358 = vmatpush1.bf16.msra.mxu0 0
      %359 = vmatprep.subr.bf16.mxu0 0
      %360 = vmatpush1.bf16.msra.mxu0 0
      %361 = vmatprep.subr.bf16.mxu0 0
      %362 = vmatpush1.bf16.msra.mxu0 0
      %363 = vmatprep.subr.bf16.mxu0 0
      %364 = vmatpush1.bf16.msra.mxu0 0
      %365 = vmatprep.subr.bf16.mxu0 %v346
      %366 = vmatpush1.bf16.msra.mxu0 %v343
      %367 = vmatprep.subr.bf16.mxu0 0
      %368 = vmatpush2.bf16.msra.mxu0 0
      %369 = vmatprep.subr.bf16.mxu0 0
      %370 = vmatpush2.bf16.msra.mxu0 0
      %371 = vmatprep.subr.bf16.mxu0 0
      %372 = vmatpush2.bf16.msra.mxu0 0
      %373 = vmatprep.subr.bf16.mxu0 0
      %374 = vmatpush2.bf16.msra.mxu0 0
      %375 = vmatprep.subr.bf16.mxu0 0
      %376 = vmatpush2.bf16.msra.mxu0 0
      %377 = vmatprep.subr.bf16.mxu0 0
      %378 = vmatpush2.bf16.msra.mxu0 0
      %379 = vmatprep.subr.bf16.mxu0 0
      %380 = vmatpush2.bf16.msra.mxu0 0
      %381 = vmatprep.subr.bf16.mxu0 0
      %382 = vmatpush2.bf16.msra.mxu0 0
      %383 = vmatprep.mubr.bf16.mxu0 0
      %384 = vmatmul.mubr.bf16.gmra.mxu0 %v339
      %v385 = vpop.f32.mrf.mxu0
      %v386 = vadd.f32 0.0, %v385
      %v387 = vpop.f32.mrf.mxu0
      %v388 = vadd.f32 0.0, %v387
      %v389 = vpop.f32.mrf.mxu0
      %v390 = vpop.f32.mrf.mxu0
      %391 = vdwg.mxu0
      %392 = vmatprep.subr.bf16.mxu0 0
      %393 = vmatpush1.bf16.msra.mxu0 0
      %394 = vmatprep.subr.bf16.mxu0 0
      %395 = vmatpush1.bf16.msra.mxu0 0
      %396 = vmatprep.subr.bf16.mxu0 0
      %397 = vmatpush1.bf16.msra.mxu0 0
      %398 = vmatprep.subr.bf16.mxu0 0
      %399 = vmatpush1.bf16.msra.mxu0 0
      %400 = vmatprep.subr.bf16.mxu0 0
      %401 = vmatpush1.bf16.msra.mxu0 0
      %402 = vmatprep.subr.bf16.mxu0 0
      %403 = vmatpush1.bf16.msra.mxu0 0
      %404 = vmatprep.subr.bf16.mxu0 0
      %405 = vmatpush1.bf16.msra.mxu0 0
      %406 = vmatprep.subr.bf16.mxu0 0
      %407 = vmatpush1.bf16.msra.mxu0 %v349
      %408 = vmatprep.subr.bf16.mxu0 0
      %409 = vmatpush2.bf16.msra.mxu0 0
      %410 = vmatprep.subr.bf16.mxu0 0
      %411 = vmatpush2.bf16.msra.mxu0 0
      %412 = vmatprep.subr.bf16.mxu0 0
      %413 = vmatpush2.bf16.msra.mxu0 0
      %414 = vmatprep.subr.bf16.mxu0 0
      %415 = vmatpush2.bf16.msra.mxu0 0
      %416 = vmatprep.subr.bf16.mxu0 0
      %417 = vmatpush2.bf16.msra.mxu0 0
      %418 = vmatprep.subr.bf16.mxu0 0
      %419 = vmatpush2.bf16.msra.mxu0 0
      %420 = vmatprep.subr.bf16.mxu0 0
      %421 = vmatpush2.bf16.msra.mxu0 0
      %422 = vmatprep.subr.bf16.mxu0 0
      %423 = vmatpush2.bf16.msra.mxu0 0
      %424 = vmatprep.mubr.bf16.mxu0 0
      %425 = vmatmul.mubr.bf16.gmra.mxu0 %v339
      %v426 = vpop.f32.mrf.mxu0
      %v427 = vadd.f32 0.0, %v426
      %v428 = vpop.f32.mrf.mxu0
      %v429 = vpop.f32.mrf.mxu0
      %v430 = vpop.f32.mrf.mxu0
      %431 = vdwg.mxu0
      %v433 = vsel %vm337, %v307, 0
      %v436 = vsel %vm341, %v319, 0
      %v439 = vsel %vm341, %v327, 0
      %v442 = vsel %vm341, %v326, 0
      %444 = vmatprep.subr.bf16.mxu0 0
      %445 = vmatpush1.bf16.msra.mxu0 0
      %446 = vmatprep.subr.bf16.mxu0 0
      %447 = vmatpush1.bf16.msra.mxu0 0
      %448 = vmatprep.subr.bf16.mxu0 0
      %449 = vmatpush1.bf16.msra.mxu0 0
      %450 = vmatprep.subr.bf16.mxu0 0
      %451 = vmatpush1.bf16.msra.mxu0 0
      %452 = vmatprep.subr.bf16.mxu0 0
      %453 = vmatpush1.bf16.msra.mxu0 0
      %454 = vmatprep.subr.bf16.mxu0 0
      %455 = vmatpush1.bf16.msra.mxu0 0
      %456 = vmatprep.subr.bf16.mxu0 0
      %457 = vmatpush1.bf16.msra.mxu0 0
      %458 = vmatprep.subr.bf16.mxu0 %v439
      %459 = vmatpush1.bf16.msra.mxu0 %v436
      %460 = vmatprep.subr.bf16.mxu0 0
      %461 = vmatpush2.bf16.msra.mxu0 0
      %462 = vmatprep.subr.bf16.mxu0 0
      %463 = vmatpush2.bf16.msra.mxu0 0
      %464 = vmatprep.subr.bf16.mxu0 0
      %465 = vmatpush2.bf16.msra.mxu0 0
      %466 = vmatprep.subr.bf16.mxu0 0
      %467 = vmatpush2.bf16.msra.mxu0 0
      %468 = vmatprep.subr.bf16.mxu0 0
      %469 = vmatpush2.bf16.msra.mxu0 0
      %470 = vmatprep.subr.bf16.mxu0 0
      %471 = vmatpush2.bf16.msra.mxu0 0
      %472 = vmatprep.subr.bf16.mxu0 0
      %473 = vmatpush2.bf16.msra.mxu0 0
      %474 = vmatprep.subr.bf16.mxu0 0
      %475 = vmatpush2.bf16.msra.mxu0 0
      %476 = vmatprep.mubr.bf16.mxu0 0
      %477 = vmatmul.mubr.bf16.gmra.mxu0 %v433
      %v478 = vpop.f32.mrf.mxu0
      %v479 = vadd.f32 %v386, %v478
      %v480 = vpop.f32.mrf.mxu0
      %v481 = vadd.f32 %v388, %v480
      %v482 = vpop.f32.mrf.mxu0
      %v483 = vpop.f32.mrf.mxu0
      %484 = vdwg.mxu0
      %485 = vmatprep.subr.bf16.mxu0 0
      %486 = vmatpush1.bf16.msra.mxu0 0
      %487 = vmatprep.subr.bf16.mxu0 0
      %488 = vmatpush1.bf16.msra.mxu0 0
      %489 = vmatprep.subr.bf16.mxu0 0
      %490 = vmatpush1.bf16.msra.mxu0 0
      %491 = vmatprep.subr.bf16.mxu0 0
      %492 = vmatpush1.bf16.msra.mxu0 0
      %493 = vmatprep.subr.bf16.mxu0 0
      %494 = vmatpush1.bf16.msra.mxu0 0
      %495 = vmatprep.subr.bf16.mxu0 0
      %496 = vmatpush1.bf16.msra.mxu0 0
      %497 = vmatprep.subr.bf16.mxu0 0
      %498 = vmatpush1.bf16.msra.mxu0 0
      %499 = vmatprep.subr.bf16.mxu0 0
      %500 = vmatpush1.bf16.msra.mxu0 %v442
      %501 = vmatprep.subr.bf16.mxu0 0
      %502 = vmatpush2.bf16.msra.mxu0 0
      %503 = vmatprep.subr.bf16.mxu0 0
      %504 = vmatpush2.bf16.msra.mxu0 0
      %505 = vmatprep.subr.bf16.mxu0 0
      %506 = vmatpush2.bf16.msra.mxu0 0
      %507 = vmatprep.subr.bf16.mxu0 0
      %508 = vmatpush2.bf16.msra.mxu0 0
      %509 = vmatprep.subr.bf16.mxu0 0
      %510 = vmatpush2.bf16.msra.mxu0 0
      %511 = vmatprep.subr.bf16.mxu0 0
      %512 = vmatpush2.bf16.msra.mxu0 0
      %513 = vmatprep.subr.bf16.mxu0 0
      %514 = vmatpush2.bf16.msra.mxu0 0
      %515 = vmatprep.subr.bf16.mxu0 0
      %516 = vmatpush2.bf16.msra.mxu0 0
      %517 = vmatprep.mubr.bf16.mxu0 0
      %518 = vmatmul.mubr.bf16.gmra.mxu0 %v433
      %v519 = vpop.f32.mrf.mxu0
      %v520 = vadd.f32 %v427, %v519
      %v521 = vpop.f32.mrf.mxu0
      %v522 = vpop.f32.mrf.mxu0
      %v523 = vpop.f32.mrf.mxu0
      %524 = vdwg.mxu0
      %s525 = scalar_lea.vmem %s1, 8
      %v526 = vld [vmem:[%s525] sm:$0xf]
      %v527 = vld [vmem:[%s300] sm:$0x3f]
      %v529 = vcombine.high %v527, %v527
      %v531 = vunpack.c.l.s4 1983009808
      %v532 = vunpack.c.0.s8 %v531
      %v533 = vlaneseq
      %v534 = vshrl.u32 %v533, 7
      %v535 = vsub.s32 %v532, %v534
      %v536 = vrot.slane %v527, %v535
      %v538 = vunpack.c.l.s4 1983009808
      %v539 = vunpack.c.0.s8 %v538
      %v540 = vlaneseq
      %v541 = vshrl.u32 %v540, 7
      %v542 = vsub.s32 %v539, %v541
      %v543 = vrot.slane %v529, %v542
      %v544 = vcombine.high %v536, %v536
      %545 = vrot.lane.b32.xlu0 %v536, 126
      %v546 = vpop.permute.xlu0 %545
      %547 = vrot.lane.b32.xlu0 %v544, 126
      %v548 = vpop.permute.xlu0 %547
      %549 = vrot.lane.b32.xlu0 %v543, 126
      %v550 = vpop.permute.xlu0 %549
      %vm551 = vcmask 1031168
      %v552 = vsel %vm551, %v546, %v548
      %v553 = vsel %vm551, %v548, %v550
      %v555 = vsel %vm337, %v526, 0
      %v558 = vsel %vm341, %v552, 0
      %v561 = vsel %vm341, %v553, 0
      %v564 = vsel %vm341, %v550, 0
      %566 = vmatprep.subr.bf16.mxu0 0
      %567 = vmatpush1.bf16.msra.mxu0 0
      %568 = vmatprep.subr.bf16.mxu0 0
      %569 = vmatpush1.bf16.msra.mxu0 0
      %570 = vmatprep.subr.bf16.mxu0 0
      %571 = vmatpush1.bf16.msra.mxu0 0
      %572 = vmatprep.subr.bf16.mxu0 0
      %573 = vmatpush1.bf16.msra.mxu0 0
      %574 = vmatprep.subr.bf16.mxu0 0
      %575 = vmatpush1.bf16.msra.mxu0 0
      %576 = vmatprep.subr.bf16.mxu0 0
      %577 = vmatpush1.bf16.msra.mxu0 0
      %578 = vmatprep.subr.bf16.mxu0 0
      %579 = vmatpush1.bf16.msra.mxu0 0
      %580 = vmatprep.subr.bf16.mxu0 %v561
      %581 = vmatpush1.bf16.msra.mxu0 %v558
      %582 = vmatprep.subr.bf16.mxu0 0
      %583 = vmatpush2.bf16.msra.mxu0 0
      %584 = vmatprep.subr.bf16.mxu0 0
      %585 = vmatpush2.bf16.msra.mxu0 0
      %586 = vmatprep.subr.bf16.mxu0 0
      %587 = vmatpush2.bf16.msra.mxu0 0
      %588 = vmatprep.subr.bf16.mxu0 0
      %589 = vmatpush2.bf16.msra.mxu0 0
      %590 = vmatprep.subr.bf16.mxu0 0
      %591 = vmatpush2.bf16.msra.mxu0 0
      %592 = vmatprep.subr.bf16.mxu0 0
      %593 = vmatpush2.bf16.msra.mxu0 0
      %594 = vmatprep.subr.bf16.mxu0 0
      %595 = vmatpush2.bf16.msra.mxu0 0
      %596 = vmatprep.subr.bf16.mxu0 0
      %597 = vmatpush2.bf16.msra.mxu0 0
      %598 = vmatprep.mubr.bf16.mxu0 0
      %599 = vmatmul.mubr.bf16.gmra.mxu0 %v555
      %v600 = vpop.f32.mrf.mxu0
      %v601 = vadd.f32 0.0, %v600
      %v602 = vpop.f32.mrf.mxu0
      %v603 = vadd.f32 0.0, %v602
      %v604 = vpop.f32.mrf.mxu0
      %v605 = vpop.f32.mrf.mxu0
      %606 = vdwg.mxu0
      %607 = vmatprep.subr.bf16.mxu0 0
      %608 = vmatpush1.bf16.msra.mxu0 0
      %609 = vmatprep.subr.bf16.mxu0 0
      %610 = vmatpush1.bf16.msra.mxu0 0
      %611 = vmatprep.subr.bf16.mxu0 0
      %612 = vmatpush1.bf16.msra.mxu0 0
      %613 = vmatprep.subr.bf16.mxu0 0
      %614 = vmatpush1.bf16.msra.mxu0 0
      %615 = vmatprep.subr.bf16.mxu0 0
      %616 = vmatpush1.bf16.msra.mxu0 0
      %617 = vmatprep.subr.bf16.mxu0 0
      %618 = vmatpush1.bf16.msra.mxu0 0
      %619 = vmatprep.subr.bf16.mxu0 0
      %620 = vmatpush1.bf16.msra.mxu0 0
      %621 = vmatprep.subr.bf16.mxu0 0
      %622 = vmatpush1.bf16.msra.mxu0 %v564
      %623 = vmatprep.subr.bf16.mxu0 0
      %624 = vmatpush2.bf16.msra.mxu0 0
      %625 = vmatprep.subr.bf16.mxu0 0
      %626 = vmatpush2.bf16.msra.mxu0 0
      %627 = vmatprep.subr.bf16.mxu0 0
      %628 = vmatpush2.bf16.msra.mxu0 0
      %629 = vmatprep.subr.bf16.mxu0 0
      %630 = vmatpush2.bf16.msra.mxu0 0
      %631 = vmatprep.subr.bf16.mxu0 0
      %632 = vmatpush2.bf16.msra.mxu0 0
      %633 = vmatprep.subr.bf16.mxu0 0
      %634 = vmatpush2.bf16.msra.mxu0 0
      %635 = vmatprep.subr.bf16.mxu0 0
      %636 = vmatpush2.bf16.msra.mxu0 0
      %637 = vmatprep.subr.bf16.mxu0 0
      %638 = vmatpush2.bf16.msra.mxu0 0
      %639 = vmatprep.mubr.bf16.mxu0 0
      %640 = vmatmul.mubr.bf16.gmra.mxu0 %v555
      %v641 = vpop.f32.mrf.mxu0
      %v642 = vadd.f32 0.0, %v641
      %v643 = vpop.f32.mrf.mxu0
      %v644 = vpop.f32.mrf.mxu0
      %v645 = vpop.f32.mrf.mxu0
      %646 = vdwg.mxu0
      %v647 = vadd.f32 %v479, %v601
      %v648 = vadd.f32 %v481, %v603
      %v649 = vadd.f32 %v520, %v642
      %s650 = scalar_lea.vmem %s1, 12
      %v651 = vld [vmem:[%s650] sm:$0xf]
      %v652 = vld [vmem:[%s300] sm:$0x3f]
      %v654 = vcombine.high %v652, %v652
      %v656 = vunpack.c.l.s4 1983009808
      %v657 = vunpack.c.0.s8 %v656
      %v658 = vlaneseq
      %v659 = vshrl.u32 %v658, 7
      %v660 = vsub.s32 %v657, %v659
      %v661 = vrot.slane %v652, %v660
      %v663 = vunpack.c.l.s4 1983009808
      %v664 = vunpack.c.0.s8 %v663
      %v665 = vlaneseq
      %v666 = vshrl.u32 %v665, 7
      %v667 = vsub.s32 %v664, %v666
      %v668 = vrot.slane %v654, %v667
      %v669 = vcombine.high %v661, %v661
      %670 = vrot.lane.b32.xlu0 %v661, 110
      %v671 = vpop.permute.xlu0 %670
      %672 = vrot.lane.b32.xlu0 %v669, 110
      %v673 = vpop.permute.xlu0 %672
      %674 = vrot.lane.b32.xlu0 %v668, 110
      %v675 = vpop.permute.xlu0 %674
      %vm676 = vcmask 900096
      %v677 = vsel %vm676, %v671, %v673
      %v678 = vsel %vm676, %v673, %v675
      %v680 = vsel %vm337, %v651, 0
      %v683 = vsel %vm341, %v677, 0
      %v686 = vsel %vm341, %v678, 0
      %v689 = vsel %vm341, %v675, 0
      %691 = vmatprep.subr.bf16.mxu0 0
      %692 = vmatpush1.bf16.msra.mxu0 0
      %693 = vmatprep.subr.bf16.mxu0 0
      %694 = vmatpush1.bf16.msra.mxu0 0
      %695 = vmatprep.subr.bf16.mxu0 0
      %696 = vmatpush1.bf16.msra.mxu0 0
      %697 = vmatprep.subr.bf16.mxu0 0
      %698 = vmatpush1.bf16.msra.mxu0 0
      %699 = vmatprep.subr.bf16.mxu0 0
      %700 = vmatpush1.bf16.msra.mxu0 0
      %701 = vmatprep.subr.bf16.mxu0 0
      %702 = vmatpush1.bf16.msra.mxu0 0
      %703 = vmatprep.subr.bf16.mxu0 0
      %704 = vmatpush1.bf16.msra.mxu0 0
      %705 = vmatprep.subr.bf16.mxu0 %v686
      %706 = vmatpush1.bf16.msra.mxu0 %v683
      %707 = vmatprep.subr.bf16.mxu0 0
      %708 = vmatpush2.bf16.msra.mxu0 0
      %709 = vmatprep.subr.bf16.mxu0 0
      %710 = vmatpush2.bf16.msra.mxu0 0
      %711 = vmatprep.subr.bf16.mxu0 0
      %712 = vmatpush2.bf16.msra.mxu0 0
      %713 = vmatprep.subr.bf16.mxu0 0
      %714 = vmatpush2.bf16.msra.mxu0 0
      %715 = vmatprep.subr.bf16.mxu0 0
      %716 = vmatpush2.bf16.msra.mxu0 0
      %717 = vmatprep.subr.bf16.mxu0 0
      %718 = vmatpush2.bf16.msra.mxu0 0
      %719 = vmatprep.subr.bf16.mxu0 0
      %720 = vmatpush2.bf16.msra.mxu0 0
      %721 = vmatprep.subr.bf16.mxu0 0
      %722 = vmatpush2.bf16.msra.mxu0 0
      %723 = vmatprep.mubr.bf16.mxu0 0
      %724 = vmatmul.mubr.bf16.gmra.mxu0 %v680
      %v725 = vpop.f32.mrf.mxu0
      %v726 = vadd.f32 0.0, %v725
      %v727 = vpop.f32.mrf.mxu0
      %v728 = vadd.f32 0.0, %v727
      %v729 = vpop.f32.mrf.mxu0
      %v730 = vpop.f32.mrf.mxu0
      %731 = vdwg.mxu0
      %732 = vmatprep.subr.bf16.mxu0 0
      %733 = vmatpush1.bf16.msra.mxu0 0
      %734 = vmatprep.subr.bf16.mxu0 0
      %735 = vmatpush1.bf16.msra.mxu0 0
      %736 = vmatprep.subr.bf16.mxu0 0
      %737 = vmatpush1.bf16.msra.mxu0 0
      %738 = vmatprep.subr.bf16.mxu0 0
      %739 = vmatpush1.bf16.msra.mxu0 0
      %740 = vmatprep.subr.bf16.mxu0 0
      %741 = vmatpush1.bf16.msra.mxu0 0
      %742 = vmatprep.subr.bf16.mxu0 0
      %743 = vmatpush1.bf16.msra.mxu0 0
      %744 = vmatprep.subr.bf16.mxu0 0
      %745 = vmatpush1.bf16.msra.mxu0 0
      %746 = vmatprep.subr.bf16.mxu0 0
      %747 = vmatpush1.bf16.msra.mxu0 %v689
      %748 = vmatprep.subr.bf16.mxu0 0
      %749 = vmatpush2.bf16.msra.mxu0 0
      %750 = vmatprep.subr.bf16.mxu0 0
      %751 = vmatpush2.bf16.msra.mxu0 0
      %752 = vmatprep.subr.bf16.mxu0 0
      %753 = vmatpush2.bf16.msra.mxu0 0
      %754 = vmatprep.subr.bf16.mxu0 0
      %755 = vmatpush2.bf16.msra.mxu0 0
      %756 = vmatprep.subr.bf16.mxu0 0
      %757 = vmatpush2.bf16.msra.mxu0 0
      %758 = vmatprep.subr.bf16.mxu0 0
      %759 = vmatpush2.bf16.msra.mxu0 0
      %760 = vmatprep.subr.bf16.mxu0 0
      %761 = vmatpush2.bf16.msra.mxu0 0
      %762 = vmatprep.subr.bf16.mxu0 0
      %763 = vmatpush2.bf16.msra.mxu0 0
      %764 = vmatprep.mubr.bf16.mxu0 0
      %765 = vmatmul.mubr.bf16.gmra.mxu0 %v680
      %v766 = vpop.f32.mrf.mxu0
      %v767 = vadd.f32 0.0, %v766
      %v768 = vpop.f32.mrf.mxu0
      %v769 = vpop.f32.mrf.mxu0
      %v770 = vpop.f32.mrf.mxu0
      %771 = vdwg.mxu0
      %v772 = vadd.f32 %v647, %v726
      %v773 = vadd.f32 %v648, %v728
      %v774 = vadd.f32 %v649, %v767
      %s775 = scalar_lea.vmem %s1, 16
      %v776 = vld [vmem:[%s775] sm:$0xf]
      %v777 = vld [vmem:[%s300] sm:$0x3f]
      %v779 = vcombine.high %v777, %v777
      %v781 = vunpack.c.l.s4 1983009808
      %v782 = vunpack.c.0.s8 %v781
      %v783 = vlaneseq
      %v784 = vshrl.u32 %v783, 7
      %v785 = vsub.s32 %v782, %v784
      %v786 = vrot.slane %v777, %v785
      %v788 = vunpack.c.l.s4 1983009808
      %v789 = vunpack.c.0.s8 %v788
      %v790 = vlaneseq
      %v791 = vshrl.u32 %v790, 7
      %v792 = vsub.s32 %v789, %v791
      %v793 = vrot.slane %v779, %v792
      %v794 = vcombine.high %v786, %v786
      %795 = vrot.lane.b32.xlu0 %v786, 109
      %v796 = vpop.permute.xlu0 %795
      %797 = vrot.lane.b32.xlu0 %v794, 109
      %v798 = vpop.permute.xlu0 %797
      %799 = vrot.lane.b32.xlu0 %v793, 109
      %v800 = vpop.permute.xlu0 %799
      %vm801 = vcmask 891904
      %v802 = vsel %vm801, %v796, %v798
      %v803 = vsel %vm801, %v798, %v800
      %v805 = vsel %vm337, %v776, 0
      %v808 = vsel %vm341, %v802, 0
      %v811 = vsel %vm341, %v803, 0
      %v814 = vsel %vm341, %v800, 0
      %816 = vmatprep.subr.bf16.mxu0 0
      %817 = vmatpush1.bf16.msra.mxu0 0
      %818 = vmatprep.subr.bf16.mxu0 0
      %819 = vmatpush1.bf16.msra.mxu0 0
      %820 = vmatprep.subr.bf16.mxu0 0
      %821 = vmatpush1.bf16.msra.mxu0 0
      %822 = vmatprep.subr.bf16.mxu0 0
      %823 = vmatpush1.bf16.msra.mxu0 0
      %824 = vmatprep.subr.bf16.mxu0 0
      %825 = vmatpush1.bf16.msra.mxu0 0
      %826 = vmatprep.subr.bf16.mxu0 0
      %827 = vmatpush1.bf16.msra.mxu0 0
      %828 = vmatprep.subr.bf16.mxu0 0
      %829 = vmatpush1.bf16.msra.mxu0 0
      %830 = vmatprep.subr.bf16.mxu0 %v811
      %831 = vmatpush1.bf16.msra.mxu0 %v808
      %832 = vmatprep.subr.bf16.mxu0 0
      %833 = vmatpush2.bf16.msra.mxu0 0
      %834 = vmatprep.subr.bf16.mxu0 0
      %835 = vmatpush2.bf16.msra.mxu0 0
      %836 = vmatprep.subr.bf16.mxu0 0
      %837 = vmatpush2.bf16.msra.mxu0 0
      %838 = vmatprep.subr.bf16.mxu0 0
      %839 = vmatpush2.bf16.msra.mxu0 0
      %840 = vmatprep.subr.bf16.mxu0 0
      %841 = vmatpush2.bf16.msra.mxu0 0
      %842 = vmatprep.subr.bf16.mxu0 0
      %843 = vmatpush2.bf16.msra.mxu0 0
      %844 = vmatprep.subr.bf16.mxu0 0
      %845 = vmatpush2.bf16.msra.mxu0 0
      %846 = vmatprep.subr.bf16.mxu0 0
      %847 = vmatpush2.bf16.msra.mxu0 0
      %848 = vmatprep.mubr.bf16.mxu0 0
      %849 = vmatmul.mubr.bf16.gmra.mxu0 %v805
      %v850 = vpop.f32.mrf.mxu0
      %v851 = vadd.f32 0.0, %v850
      %v852 = vpop.f32.mrf.mxu0
      %v853 = vadd.f32 0.0, %v852
      %v854 = vpop.f32.mrf.mxu0
      %v855 = vpop.f32.mrf.mxu0
      %856 = vdwg.mxu0
      %857 = vmatprep.subr.bf16.mxu0 0
      %858 = vmatpush1.bf16.msra.mxu0 0
      %859 = vmatprep.subr.bf16.mxu0 0
      %860 = vmatpush1.bf16.msra.mxu0 0
      %861 = vmatprep.subr.bf16.mxu0 0
      %862 = vmatpush1.bf16.msra.mxu0 0
      %863 = vmatprep.subr.bf16.mxu0 0
      %864 = vmatpush1.bf16.msra.mxu0 0
      %865 = vmatprep.subr.bf16.mxu0 0
      %866 = vmatpush1.bf16.msra.mxu0 0
      %867 = vmatprep.subr.bf16.mxu0 0
      %868 = vmatpush1.bf16.msra.mxu0 0
      %869 = vmatprep.subr.bf16.mxu0 0
      %870 = vmatpush1.bf16.msra.mxu0 0
      %871 = vmatprep.subr.bf16.mxu0 0
      %872 = vmatpush1.bf16.msra.mxu0 %v814
      %873 = vmatprep.subr.bf16.mxu0 0
      %874 = vmatpush2.bf16.msra.mxu0 0
      %875 = vmatprep.subr.bf16.mxu0 0
      %876 = vmatpush2.bf16.msra.mxu0 0
      %877 = vmatprep.subr.bf16.mxu0 0
      %878 = vmatpush2.bf16.msra.mxu0 0
      %879 = vmatprep.subr.bf16.mxu0 0
      %880 = vmatpush2.bf16.msra.mxu0 0
      %881 = vmatprep.subr.bf16.mxu0 0
      %882 = vmatpush2.bf16.msra.mxu0 0
      %883 = vmatprep.subr.bf16.mxu0 0
      %884 = vmatpush2.bf16.msra.mxu0 0
      %885 = vmatprep.subr.bf16.mxu0 0
      %886 = vmatpush2.bf16.msra.mxu0 0
      %887 = vmatprep.subr.bf16.mxu0 0
      %888 = vmatpush2.bf16.msra.mxu0 0
      %889 = vmatprep.mubr.bf16.mxu0 0
      %890 = vmatmul.mubr.bf16.gmra.mxu0 %v805
      %v891 = vpop.f32.mrf.mxu0
      %v892 = vadd.f32 0.0, %v891
      %v893 = vpop.f32.mrf.mxu0
      %v894 = vpop.f32.mrf.mxu0
      %v895 = vpop.f32.mrf.mxu0
      %896 = vdwg.mxu0
      %v897 = vadd.f32 %v772, %v851
      %v898 = vadd.f32 %v773, %v853
      %v899 = vadd.f32 %v774, %v892
      %s900 = scalar_lea.vmem %s1, 20
      %v901 = vld [vmem:[%s900] sm:$0xf]
      %v902 = vld [vmem:[%s300] sm:$0x3f]
      %v904 = vcombine.high %v902, %v902
      %v906 = vunpack.c.l.s4 1983009808
      %v907 = vunpack.c.0.s8 %v906
      %v908 = vlaneseq
      %v909 = vshrl.u32 %v908, 7
      %v910 = vsub.s32 %v907, %v909
      %v911 = vrot.slane %v902, %v910
      %v913 = vunpack.c.l.s4 1983009808
      %v914 = vunpack.c.0.s8 %v913
      %v915 = vlaneseq
      %v916 = vshrl.u32 %v915, 7
      %v917 = vsub.s32 %v914, %v916
      %v918 = vrot.slane %v904, %v917
      %v919 = vcombine.high %v911, %v911
      %920 = vrot.lane.b32.xlu0 %v911, 108
      %v921 = vpop.permute.xlu0 %920
      %922 = vrot.lane.b32.xlu0 %v919, 108
      %v923 = vpop.permute.xlu0 %922
      %924 = vrot.lane.b32.xlu0 %v918, 108
      %v925 = vpop.permute.xlu0 %924
      %vm926 = vcmask 883712
      %v927 = vsel %vm926, %v921, %v923
      %v928 = vsel %vm926, %v923, %v925
      %v930 = vsel %vm337, %v901, 0
      %v933 = vsel %vm341, %v927, 0
      %v936 = vsel %vm341, %v928, 0
      %v939 = vsel %vm341, %v925, 0
      %941 = vmatprep.subr.bf16.mxu0 0
      %942 = vmatpush1.bf16.msra.mxu0 0
      %943 = vmatprep.subr.bf16.mxu0 0
      %944 = vmatpush1.bf16.msra.mxu0 0
      %945 = vmatprep.subr.bf16.mxu0 0
      %946 = vmatpush1.bf16.msra.mxu0 0
      %947 = vmatprep.subr.bf16.mxu0 0
      %948 = vmatpush1.bf16.msra.mxu0 0
      %949 = vmatprep.subr.bf16.mxu0 0
      %950 = vmatpush1.bf16.msra.mxu0 0
      %951 = vmatprep.subr.bf16.mxu0 0
      %952 = vmatpush1.bf16.msra.mxu0 0
      %953 = vmatprep.subr.bf16.mxu0 0
      %954 = vmatpush1.bf16.msra.mxu0 0
      %955 = vmatprep.subr.bf16.mxu0 %v936
      %956 = vmatpush1.bf16.msra.mxu0 %v933
      %957 = vmatprep.subr.bf16.mxu0 0
      %958 = vmatpush2.bf16.msra.mxu0 0
      %959 = vmatprep.subr.bf16.mxu0 0
      %960 = vmatpush2.bf16.msra.mxu0 0
      %961 = vmatprep.subr.bf16.mxu0 0
      %962 = vmatpush2.bf16.msra.mxu0 0
      %963 = vmatprep.subr.bf16.mxu0 0
      %964 = vmatpush2.bf16.msra.mxu0 0
      %965 = vmatprep.subr.bf16.mxu0 0
      %966 = vmatpush2.bf16.msra.mxu0 0
      %967 = vmatprep.subr.bf16.mxu0 0
      %968 = vmatpush2.bf16.msra.mxu0 0
      %969 = vmatprep.subr.bf16.mxu0 0
      %970 = vmatpush2.bf16.msra.mxu0 0
      %971 = vmatprep.subr.bf16.mxu0 0
      %972 = vmatpush2.bf16.msra.mxu0 0
      %973 = vmatprep.mubr.bf16.mxu0 0
      %974 = vmatmul.mubr.bf16.gmra.mxu0 %v930
      %v975 = vpop.f32.mrf.mxu0
      %v976 = vadd.f32 0.0, %v975
      %v977 = vpop.f32.mrf.mxu0
      %v978 = vadd.f32 0.0, %v977
      %v979 = vpop.f32.mrf.mxu0
      %v980 = vpop.f32.mrf.mxu0
      %981 = vdwg.mxu0
      %982 = vmatprep.subr.bf16.mxu0 0
      %983 = vmatpush1.bf16.msra.mxu0 0
      %984 = vmatprep.subr.bf16.mxu0 0
      %985 = vmatpush1.bf16.msra.mxu0 0
      %986 = vmatprep.subr.bf16.mxu0 0
      %987 = vmatpush1.bf16.msra.mxu0 0
      %988 = vmatprep.subr.bf16.mxu0 0
      %989 = vmatpush1.bf16.msra.mxu0 0
      %990 = vmatprep.subr.bf16.mxu0 0
      %991 = vmatpush1.bf16.msra.mxu0 0
      %992 = vmatprep.subr.bf16.mxu0 0
      %993 = vmatpush1.bf16.msra.mxu0 0
      %994 = vmatprep.subr.bf16.mxu0 0
      %995 = vmatpush1.bf16.msra.mxu0 0
      %996 = vmatprep.subr.bf16.mxu0 0
      %997 = vmatpush1.bf16.msra.mxu0 %v939
      %998 = vmatprep.subr.bf16.mxu0 0
      %999 = vmatpush2.bf16.msra.mxu0 0
      %1000 = vmatprep.subr.bf16.mxu0 0
      %1001 = vmatpush2.bf16.msra.mxu0 0
      %1002 = vmatprep.subr.bf16.mxu0 0
      %1003 = vmatpush2.bf16.msra.mxu0 0
      %1004 = vmatprep.subr.bf16.mxu0 0
      %1005 = vmatpush2.bf16.msra.mxu0 0
      %1006 = vmatprep.subr.bf16.mxu0 0
      %1007 = vmatpush2.bf16.msra.mxu0 0
      %1008 = vmatprep.subr.bf16.mxu0 0
      %1009 = vmatpush2.bf16.msra.mxu0 0
      %1010 = vmatprep.subr.bf16.mxu0 0
      %1011 = vmatpush2.bf16.msra.mxu0 0
      %1012 = vmatprep.subr.bf16.mxu0 0
      %1013 = vmatpush2.bf16.msra.mxu0 0
      %1014 = vmatprep.mubr.bf16.mxu0 0
      %1015 = vmatmul.mubr.bf16.gmra.mxu0 %v930
      %v1016 = vpop.f32.mrf.mxu0
      %v1017 = vadd.f32 0.0, %v1016
      %v1018 = vpop.f32.mrf.mxu0
      %v1019 = vpop.f32.mrf.mxu0
      %v1020 = vpop.f32.mrf.mxu0
      %1021 = vdwg.mxu0
      %v1022 = vadd.f32 %v897, %v976
      %v1023 = vadd.f32 %v898, %v978
      %v1024 = vadd.f32 %v899, %v1017
      %s1025 = scalar_lea.vmem %s1, 24
      %v1026 = vld [vmem:[%s1025] sm:$0xf]
      %v1027 = vld [vmem:[%s300] sm:$0x3f]
      %v1029 = vcombine.high %v1027, %v1027
      %v1031 = vunpack.c.l.s4 1983009808
      %v1032 = vunpack.c.0.s8 %v1031
      %v1033 = vlaneseq
      %v1034 = vshrl.u32 %v1033, 7
      %v1035 = vsub.s32 %v1032, %v1034
      %v1036 = vrot.slane %v1027, %v1035
      %v1038 = vunpack.c.l.s4 1983009808
      %v1039 = vunpack.c.0.s8 %v1038
      %v1040 = vlaneseq
      %v1041 = vshrl.u32 %v1040, 7
      %v1042 = vsub.s32 %v1039, %v1041
      %v1043 = vrot.slane %v1029, %v1042
      %v1044 = vcombine.high %v1036, %v1036
      %1045 = vrot.lane.b32.xlu0 %v1036, 92
      %v1046 = vpop.permute.xlu0 %1045
      %1047 = vrot.lane.b32.xlu0 %v1044, 92
      %v1048 = vpop.permute.xlu0 %1047
      %1049 = vrot.lane.b32.xlu0 %v1043, 92
      %v1050 = vpop.permute.xlu0 %1049
      %vm1051 = vcmask 752640
      %v1052 = vsel %vm1051, %v1046, %v1048
      %v1053 = vsel %vm1051, %v1048, %v1050
      %v1055 = vsel %vm337, %v1026, 0
      %v1058 = vsel %vm341, %v1052, 0
      %v1061 = vsel %vm341, %v1053, 0
      %v1064 = vsel %vm341, %v1050, 0
      %1066 = vmatprep.subr.bf16.mxu0 0
      %1067 = vmatpush1.bf16.msra.mxu0 0
      %1068 = vmatprep.subr.bf16.mxu0 0
      %1069 = vmatpush1.bf16.msra.mxu0 0
      %1070 = vmatprep.subr.bf16.mxu0 0
      %1071 = vmatpush1.bf16.msra.mxu0 0
      %1072 = vmatprep.subr.bf16.mxu0 0
      %1073 = vmatpush1.bf16.msra.mxu0 0
      %1074 = vmatprep.subr.bf16.mxu0 0
      %1075 = vmatpush1.bf16.msra.mxu0 0
      %1076 = vmatprep.subr.bf16.mxu0 0
      %1077 = vmatpush1.bf16.msra.mxu0 0
      %1078 = vmatprep.subr.bf16.mxu0 0
      %1079 = vmatpush1.bf16.msra.mxu0 0
      %1080 = vmatprep.subr.bf16.mxu0 %v1061
      %1081 = vmatpush1.bf16.msra.mxu0 %v1058
      %1082 = vmatprep.subr.bf16.mxu0 0
      %1083 = vmatpush2.bf16.msra.mxu0 0
      %1084 = vmatprep.subr.bf16.mxu0 0
      %1085 = vmatpush2.bf16.msra.mxu0 0
      %1086 = vmatprep.subr.bf16.mxu0 0
      %1087 = vmatpush2.bf16.msra.mxu0 0
      %1088 = vmatprep.subr.bf16.mxu0 0
      %1089 = vmatpush2.bf16.msra.mxu0 0
      %1090 = vmatprep.subr.bf16.mxu0 0
      %1091 = vmatpush2.bf16.msra.mxu0 0
      %1092 = vmatprep.subr.bf16.mxu0 0
      %1093 = vmatpush2.bf16.msra.mxu0 0
      %1094 = vmatprep.subr.bf16.mxu0 0
      %1095 = vmatpush2.bf16.msra.mxu0 0
      %1096 = vmatprep.subr.bf16.mxu0 0
      %1097 = vmatpush2.bf16.msra.mxu0 0
      %1098 = vmatprep.mubr.bf16.mxu0 0
      %1099 = vmatmul.mubr.bf16.gmra.mxu0 %v1055
      %v1100 = vpop.f32.mrf.mxu0
      %v1101 = vadd.f32 0.0, %v1100
      %v1102 = vpop.f32.mrf.mxu0
      %v1103 = vadd.f32 0.0, %v1102
      %v1104 = vpop.f32.mrf.mxu0
      %v1105 = vpop.f32.mrf.mxu0
      %1106 = vdwg.mxu0
      %1107 = vmatprep.subr.bf16.mxu0 0
      %1108 = vmatpush1.bf16.msra.mxu0 0
      %1109 = vmatprep.subr.bf16.mxu0 0
      %1110 = vmatpush1.bf16.msra.mxu0 0
      %1111 = vmatprep.subr.bf16.mxu0 0
      %1112 = vmatpush1.bf16.msra.mxu0 0
      %1113 = vmatprep.subr.bf16.mxu0 0
      %1114 = vmatpush1.bf16.msra.mxu0 0
      %1115 = vmatprep.subr.bf16.mxu0 0
      %1116 = vmatpush1.bf16.msra.mxu0 0
      %1117 = vmatprep.subr.bf16.mxu0 0
      %1118 = vmatpush1.bf16.msra.mxu0 0
      %1119 = vmatprep.subr.bf16.mxu0 0
      %1120 = vmatpush1.bf16.msra.mxu0 0
      %1121 = vmatprep.subr.bf16.mxu0 0
      %1122 = vmatpush1.bf16.msra.mxu0 %v1064
      %1123 = vmatprep.subr.bf16.mxu0 0
      %1124 = vmatpush2.bf16.msra.mxu0 0
      %1125 = vmatprep.subr.bf16.mxu0 0
      %1126 = vmatpush2.bf16.msra.mxu0 0
      %1127 = vmatprep.subr.bf16.mxu0 0
      %1128 = vmatpush2.bf16.msra.mxu0 0
      %1129 = vmatprep.subr.bf16.mxu0 0
      %1130 = vmatpush2.bf16.msra.mxu0 0
      %1131 = vmatprep.subr.bf16.mxu0 0
      %1132 = vmatpush2.bf16.msra.mxu0 0
      %1133 = vmatprep.subr.bf16.mxu0 0
      %1134 = vmatpush2.bf16.msra.mxu0 0
      %1135 = vmatprep.subr.bf16.mxu0 0
      %1136 = vmatpush2.bf16.msra.mxu0 0
      %1137 = vmatprep.subr.bf16.mxu0 0
      %1138 = vmatpush2.bf16.msra.mxu0 0
      %1139 = vmatprep.mubr.bf16.mxu0 0
      %1140 = vmatmul.mubr.bf16.gmra.mxu0 %v1055
      %v1141 = vpop.f32.mrf.mxu0
      %v1142 = vadd.f32 0.0, %v1141
      %v1143 = vpop.f32.mrf.mxu0
      %v1144 = vpop.f32.mrf.mxu0
      %v1145 = vpop.f32.mrf.mxu0
      %1146 = vdwg.mxu0
      %v1147 = vadd.f32 %v1022, %v1101
      %v1148 = vadd.f32 %v1023, %v1103
      %v1149 = vadd.f32 %v1024, %v1142
      %s1150 = scalar_lea.vmem %s1, 28
      %v1151 = vld [vmem:[%s1150] sm:$0xf]
      %v1152 = vld [vmem:[%s300] sm:$0x3f]
      %v1154 = vcombine.high %v1152, %v1152
      %v1156 = vunpack.c.l.s4 1983009808
      %v1157 = vunpack.c.0.s8 %v1156
      %v1158 = vlaneseq
      %v1159 = vshrl.u32 %v1158, 7
      %v1160 = vsub.s32 %v1157, %v1159
      %v1161 = vrot.slane %v1152, %v1160
      %v1163 = vunpack.c.l.s4 1983009808
      %v1164 = vunpack.c.0.s8 %v1163
      %v1165 = vlaneseq
      %v1166 = vshrl.u32 %v1165, 7
      %v1167 = vsub.s32 %v1164, %v1166
      %v1168 = vrot.slane %v1154, %v1167
      %v1169 = vcombine.high %v1161, %v1161
      %1170 = vrot.lane.b32.xlu0 %v1161, 91
      %v1171 = vpop.permute.xlu0 %1170
      %1172 = vrot.lane.b32.xlu0 %v1169, 91
      %v1173 = vpop.permute.xlu0 %1172
      %1174 = vrot.lane.b32.xlu0 %v1168, 91
      %v1175 = vpop.permute.xlu0 %1174
      %vm1176 = vcmask 744448
      %v1177 = vsel %vm1176, %v1171, %v1173
      %v1178 = vsel %vm1176, %v1173, %v1175
      %v1180 = vsel %vm337, %v1151, 0
      %v1183 = vsel %vm341, %v1177, 0
      %v1186 = vsel %vm341, %v1178, 0
      %v1189 = vsel %vm341, %v1175, 0
      %1191 = vmatprep.subr.bf16.mxu0 0
      %1192 = vmatpush1.bf16.msra.mxu0 0
      %1193 = vmatprep.subr.bf16.mxu0 0
      %1194 = vmatpush1.bf16.msra.mxu0 0
      %1195 = vmatprep.subr.bf16.mxu0 0
      %1196 = vmatpush1.bf16.msra.mxu0 0
      %1197 = vmatprep.subr.bf16.mxu0 0
      %1198 = vmatpush1.bf16.msra.mxu0 0
      %1199 = vmatprep.subr.bf16.mxu0 0
      %1200 = vmatpush1.bf16.msra.mxu0 0
      %1201 = vmatprep.subr.bf16.mxu0 0
      %1202 = vmatpush1.bf16.msra.mxu0 0
      %1203 = vmatprep.subr.bf16.mxu0 0
      %1204 = vmatpush1.bf16.msra.mxu0 0
      %1205 = vmatprep.subr.bf16.mxu0 %v1186
      %1206 = vmatpush1.bf16.msra.mxu0 %v1183
      %1207 = vmatprep.subr.bf16.mxu0 0
      %1208 = vmatpush2.bf16.msra.mxu0 0
      %1209 = vmatprep.subr.bf16.mxu0 0
      %1210 = vmatpush2.bf16.msra.mxu0 0
      %1211 = vmatprep.subr.bf16.mxu0 0
      %1212 = vmatpush2.bf16.msra.mxu0 0
      %1213 = vmatprep.subr.bf16.mxu0 0
      %1214 = vmatpush2.bf16.msra.mxu0 0
      %1215 = vmatprep.subr.bf16.mxu0 0
      %1216 = vmatpush2.bf16.msra.mxu0 0
      %1217 = vmatprep.subr.bf16.mxu0 0
      %1218 = vmatpush2.bf16.msra.mxu0 0
      %1219 = vmatprep.subr.bf16.mxu0 0
      %1220 = vmatpush2.bf16.msra.mxu0 0
      %1221 = vmatprep.subr.bf16.mxu0 0
      %1222 = vmatpush2.bf16.msra.mxu0 0
      %1223 = vmatprep.mubr.bf16.mxu0 0
      %1224 = vmatmul.mubr.bf16.gmra.mxu0 %v1180
      %v1225 = vpop.f32.mrf.mxu0
      %v1226 = vadd.f32 0.0, %v1225
      %v1227 = vpop.f32.mrf.mxu0
      %v1228 = vadd.f32 0.0, %v1227
      %v1229 = vpop.f32.mrf.mxu0
      %v1230 = vpop.f32.mrf.mxu0
      %1231 = vdwg.mxu0
      %1232 = vmatprep.subr.bf16.mxu0 0
      %1233 = vmatpush1.bf16.msra.mxu0 0
      %1234 = vmatprep.subr.bf16.mxu0 0
      %1235 = vmatpush1.bf16.msra.mxu0 0
      %1236 = vmatprep.subr.bf16.mxu0 0
      %1237 = vmatpush1.bf16.msra.mxu0 0
      %1238 = vmatprep.subr.bf16.mxu0 0
      %1239 = vmatpush1.bf16.msra.mxu0 0
      %1240 = vmatprep.subr.bf16.mxu0 0
      %1241 = vmatpush1.bf16.msra.mxu0 0
      %1242 = vmatprep.subr.bf16.mxu0 0
      %1243 = vmatpush1.bf16.msra.mxu0 0
      %1244 = vmatprep.subr.bf16.mxu0 0
      %1245 = vmatpush1.bf16.msra.mxu0 0
      %1246 = vmatprep.subr.bf16.mxu0 0
      %1247 = vmatpush1.bf16.msra.mxu0 %v1189
      %1248 = vmatprep.subr.bf16.mxu0 0
      %1249 = vmatpush2.bf16.msra.mxu0 0
      %1250 = vmatprep.subr.bf16.mxu0 0
      %1251 = vmatpush2.bf16.msra.mxu0 0
      %1252 = vmatprep.subr.bf16.mxu0 0
      %1253 = vmatpush2.bf16.msra.mxu0 0
      %1254 = vmatprep.subr.bf16.mxu0 0
      %1255 = vmatpush2.bf16.msra.mxu0 0
      %1256 = vmatprep.subr.bf16.mxu0 0
      %1257 = vmatpush2.bf16.msra.mxu0 0
      %1258 = vmatprep.subr.bf16.mxu0 0
      %1259 = vmatpush2.bf16.msra.mxu0 0
      %1260 = vmatprep.subr.bf16.mxu0 0
      %1261 = vmatpush2.bf16.msra.mxu0 0
      %1262 = vmatprep.subr.bf16.mxu0 0
      %1263 = vmatpush2.bf16.msra.mxu0 0
      %1264 = vmatprep.mubr.bf16.mxu0 0
      %1265 = vmatmul.mubr.bf16.gmra.mxu0 %v1180
      %v1266 = vpop.f32.mrf.mxu0
      %v1267 = vadd.f32 0.0, %v1266
      %v1268 = vpop.f32.mrf.mxu0
      %v1269 = vpop.f32.mrf.mxu0
      %v1270 = vpop.f32.mrf.mxu0
      %1271 = vdwg.mxu0
      %v1272 = vadd.f32 %v1147, %v1226
      %v1273 = vadd.f32 %v1148, %v1228
      %v1274 = vadd.f32 %v1149, %v1267
      %s1275 = scalar_lea.vmem %s1, 32
      %v1276 = vld [vmem:[%s1275] sm:$0xf]
      %v1277 = vld [vmem:[%s300] sm:$0x3f]
      %v1279 = vcombine.high %v1277, %v1277
      %v1281 = vunpack.c.l.s4 1983009808
      %v1282 = vunpack.c.0.s8 %v1281
      %v1283 = vlaneseq
      %v1284 = vshrl.u32 %v1283, 7
      %v1285 = vsub.s32 %v1282, %v1284
      %v1286 = vrot.slane %v1277, %v1285
      %v1288 = vunpack.c.l.s4 1983009808
      %v1289 = vunpack.c.0.s8 %v1288
      %v1290 = vlaneseq
      %v1291 = vshrl.u32 %v1290, 7
      %v1292 = vsub.s32 %v1289, %v1291
      %v1293 = vrot.slane %v1279, %v1292
      %v1294 = vcombine.high %v1286, %v1286
      %1295 = vrot.lane.b32.xlu0 %v1286, 90
      %v1296 = vpop.permute.xlu0 %1295
      %1297 = vrot.lane.b32.xlu0 %v1294, 90
      %v1298 = vpop.permute.xlu0 %1297
      %1299 = vrot.lane.b32.xlu0 %v1293, 90
      %v1300 = vpop.permute.xlu0 %1299
      %vm1301 = vcmask 736256
      %v1302 = vsel %vm1301, %v1296, %v1298
      %v1303 = vsel %vm1301, %v1298, %v1300
      %v1305 = vsel %vm337, %v1276, 0
      %v1308 = vsel %vm341, %v1302, 0
      %v1311 = vsel %vm341, %v1303, 0
      %v1314 = vsel %vm341, %v1300, 0
      %1316 = vmatprep.subr.bf16.mxu0 0
      %1317 = vmatpush1.bf16.msra.mxu0 0
      %1318 = vmatprep.subr.bf16.mxu0 0
      %1319 = vmatpush1.bf16.msra.mxu0 0
      %1320 = vmatprep.subr.bf16.mxu0 0
      %1321 = vmatpush1.bf16.msra.mxu0 0
      %1322 = vmatprep.subr.bf16.mxu0 0
      %1323 = vmatpush1.bf16.msra.mxu0 0
      %1324 = vmatprep.subr.bf16.mxu0 0
      %1325 = vmatpush1.bf16.msra.mxu0 0
      %1326 = vmatprep.subr.bf16.mxu0 0
      %1327 = vmatpush1.bf16.msra.mxu0 0
      %1328 = vmatprep.subr.bf16.mxu0 0
      %1329 = vmatpush1.bf16.msra.mxu0 0
      %1330 = vmatprep.subr.bf16.mxu0 %v1311
      %1331 = vmatpush1.bf16.msra.mxu0 %v1308
      %1332 = vmatprep.subr.bf16.mxu0 0
      %1333 = vmatpush2.bf16.msra.mxu0 0
      %1334 = vmatprep.subr.bf16.mxu0 0
      %1335 = vmatpush2.bf16.msra.mxu0 0
      %1336 = vmatprep.subr.bf16.mxu0 0
      %1337 = vmatpush2.bf16.msra.mxu0 0
      %1338 = vmatprep.subr.bf16.mxu0 0
      %1339 = vmatpush2.bf16.msra.mxu0 0
      %1340 = vmatprep.subr.bf16.mxu0 0
      %1341 = vmatpush2.bf16.msra.mxu0 0
      %1342 = vmatprep.subr.bf16.mxu0 0
      %1343 = vmatpush2.bf16.msra.mxu0 0
      %1344 = vmatprep.subr.bf16.mxu0 0
      %1345 = vmatpush2.bf16.msra.mxu0 0
      %1346 = vmatprep.subr.bf16.mxu0 0
      %1347 = vmatpush2.bf16.msra.mxu0 0
      %1348 = vmatprep.mubr.bf16.mxu0 0
      %1349 = vmatmul.mubr.bf16.gmra.mxu0 %v1305
      %v1350 = vpop.f32.mrf.mxu0
      %v1351 = vadd.f32 0.0, %v1350
      %v1352 = vpop.f32.mrf.mxu0
      %v1353 = vadd.f32 0.0, %v1352
      %v1354 = vpop.f32.mrf.mxu0
      %v1355 = vpop.f32.mrf.mxu0
      %1356 = vdwg.mxu0
      %1357 = vmatprep.subr.bf16.mxu0 0
      %1358 = vmatpush1.bf16.msra.mxu0 0
      %1359 = vmatprep.subr.bf16.mxu0 0
      %1360 = vmatpush1.bf16.msra.mxu0 0
      %1361 = vmatprep.subr.bf16.mxu0 0
      %1362 = vmatpush1.bf16.msra.mxu0 0
      %1363 = vmatprep.subr.bf16.mxu0 0
      %1364 = vmatpush1.bf16.msra.mxu0 0
      %1365 = vmatprep.subr.bf16.mxu0 0
      %1366 = vmatpush1.bf16.msra.mxu0 0
      %1367 = vmatprep.subr.bf16.mxu0 0
      %1368 = vmatpush1.bf16.msra.mxu0 0
      %1369 = vmatprep.subr.bf16.mxu0 0
      %1370 = vmatpush1.bf16.msra.mxu0 0
      %1371 = vmatprep.subr.bf16.mxu0 0
      %1372 = vmatpush1.bf16.msra.mxu0 %v1314
      %1373 = vmatprep.subr.bf16.mxu0 0
      %1374 = vmatpush2.bf16.msra.mxu0 0
      %1375 = vmatprep.subr.bf16.mxu0 0
      %1376 = vmatpush2.bf16.msra.mxu0 0
      %1377 = vmatprep.subr.bf16.mxu0 0
      %1378 = vmatpush2.bf16.msra.mxu0 0
      %1379 = vmatprep.subr.bf16.mxu0 0
      %1380 = vmatpush2.bf16.msra.mxu0 0
      %1381 = vmatprep.subr.bf16.mxu0 0
      %1382 = vmatpush2.bf16.msra.mxu0 0
      %1383 = vmatprep.subr.bf16.mxu0 0
      %1384 = vmatpush2.bf16.msra.mxu0 0
      %1385 = vmatprep.subr.bf16.mxu0 0
      %1386 = vmatpush2.bf16.msra.mxu0 0
      %1387 = vmatprep.subr.bf16.mxu0 0
      %1388 = vmatpush2.bf16.msra.mxu0 0
      %1389 = vmatprep.mubr.bf16.mxu0 0
      %1390 = vmatmul.mubr.bf16.gmra.mxu0 %v1305
      %v1391 = vpop.f32.mrf.mxu0
      %v1392 = vadd.f32 0.0, %v1391
      %v1393 = vpop.f32.mrf.mxu0
      %v1394 = vpop.f32.mrf.mxu0
      %v1395 = vpop.f32.mrf.mxu0
      %1396 = vdwg.mxu0
      %v1397 = vadd.f32 %v1272, %v1351
      %v1398 = vadd.f32 %v1273, %v1353
      %v1399 = vadd.f32 %v1274, %v1392
      %v1400 = vld [vmem:[%s2] sm:$0xff]
      %1402 = vset.pattern.permute.xlu0 0
      %1403 = vperm.xlu0 %1402, %v1400
      %v1404 = vpop.permute.xlu0 %1403
      %v1406 = vadd.f32 %v1397, %v1404
      %v1407 = vadd.f32 %v1398, %v1404
      %v1408 = vadd.f32 %v1399, %v1404
      %v1409 = vmax.f32 %v1406, 0.0
      %v1410 = vmax.f32 %v1407, 0.0
      %v1411 = vmax.f32 %v1408, 0.0
      %v1412 = vld [vmem:[%s7] sm:$0x7]
      %v1414 = vlaneseq
      %v1415 = vshrl.u32 %v1414, 7
      %v1416 = vsub.s32 0, %v1415
      %v1417 = vrot.slane %v1412, %v1416
      %v1418 = vlaneseq
      %v1419 = vshrl.u32 %v1418, 7
      %v1420 = vsub.s32 1, %v1419
      %v1421 = vrot.slane %v1412, %v1420
      %v1422 = vlaneseq
      %v1423 = vshrl.u32 %v1422, 7
      %v1424 = vsub.s32 2, %v1423
      %v1425 = vrot.slane %v1412, %v1424
      %v1429 = vmul.f32 %v1409, %v1417
      %v1430 = vmul.f32 %v1410, %v1421
      %v1431 = vmul.f32 %v1411, %v1425
      %v1432 = vpack.c.bf16 %v1429, %v1429
      %v1433 = vpack.c.bf16 %v1430, %v1430
      %v1434 = vpack.c.bf16 %v1431, %v1431
      %v1438 = vunpack.c.l.b16 %v1432
      %v1439 = vunpack.c.l.b16 %v1433
      %v1440 = vunpack.c.l.b16 %v1434
      %v1441 = vpack.c.b16 %v1439, %v1438
      %v1442 = vpack.c.b16 %v1440, %v1440
      %1445 = vst [vmem:[#allocation2] sm:$0xff] %v1441
      %vm1446 = vcmask 568320
      %1447 = vst.msk [vmem:[#allocation2 + $0x8] sm:$0xf] %vm1446, %v1442
      %v1448 = vld [vmem:[%s3] sm:$0xf]
      %v1449 = vld [vmem:[#allocation2] sm:$0xff]
      %v1450 = vld [vmem:[#allocation2 + $0x8] sm:$0xf]
      %s1451 = scalar_lea.vmem %s3, 4
      %v1452 = vld [vmem:[%s1451] sm:$0xf]
      %v1455 = vunpack.c.l.b16 %v1449
      %v1456 = vunpack.c.h.b16 %v1449
      %v1457 = vunpack.c.l.b16 %v1450
      %v1458 = vpack.c.b16 %v1455, %v1455
      %v1459 = vpack.c.b16 %v1456, %v1456
      %v1460 = vpack.c.b16 %v1457, %v1457
      %1461 = vrot.lane.b32.xlu0 %v1458, 127
      %v1462 = vpop.permute.xlu0 %1461
      %1463 = vrot.lane.b32.xlu0 %v1459, 127
      %v1464 = vpop.permute.xlu0 %1463
      %1465 = vrot.lane.b32.xlu0 %v1460, 127
      %v1466 = vpop.permute.xlu0 %1465
      %v1467 = vsel %vm334, %v1462, %v1464
      %v1468 = vsel %vm334, %v1464, %v1466
      %vm1469 = vcmask 64512
      %v1471 = vsel %vm1469, %v1452, 0
      %vm1473 = vcmask 1043456
      %v1475 = vsel %vm1473, %v1467, 0
      %v1478 = vsel %vm1473, %v1468, 0
      %v1481 = vsel %vm1473, %v1466, 0
      %1483 = vmatprep.subr.bf16.mxu0 0
      %1484 = vmatpush1.bf16.msra.mxu0 0
      %1485 = vmatprep.subr.bf16.mxu0 0
      %1486 = vmatpush1.bf16.msra.mxu0 0
      %1487 = vmatprep.subr.bf16.mxu0 0
      %1488 = vmatpush1.bf16.msra.mxu0 0
      %1489 = vmatprep.subr.bf16.mxu0 0
      %1490 = vmatpush1.bf16.msra.mxu0 0
      %1491 = vmatprep.subr.bf16.mxu0 0
      %1492 = vmatpush1.bf16.msra.mxu0 0
      %1493 = vmatprep.subr.bf16.mxu0 0
      %1494 = vmatpush1.bf16.msra.mxu0 0
      %1495 = vmatprep.subr.bf16.mxu0 0
      %1496 = vmatpush1.bf16.msra.mxu0 0
      %1497 = vmatprep.subr.bf16.mxu0 %v1478
      %1498 = vmatpush1.bf16.msra.mxu0 %v1475
      %1499 = vmatprep.subr.bf16.mxu0 0
      %1500 = vmatpush2.bf16.msra.mxu0 0
      %1501 = vmatprep.subr.bf16.mxu0 0
      %1502 = vmatpush2.bf16.msra.mxu0 0
      %1503 = vmatprep.subr.bf16.mxu0 0
      %1504 = vmatpush2.bf16.msra.mxu0 0
      %1505 = vmatprep.subr.bf16.mxu0 0
      %1506 = vmatpush2.bf16.msra.mxu0 0
      %1507 = vmatprep.subr.bf16.mxu0 0
      %1508 = vmatpush2.bf16.msra.mxu0 0
      %1509 = vmatprep.subr.bf16.mxu0 0
      %1510 = vmatpush2.bf16.msra.mxu0 0
      %1511 = vmatprep.subr.bf16.mxu0 0
      %1512 = vmatpush2.bf16.msra.mxu0 0
      %1513 = vmatprep.subr.bf16.mxu0 0
      %1514 = vmatpush2.bf16.msra.mxu0 0
      %1515 = vmatprep.mubr.bf16.mxu0 0
      %1516 = vmatmul.mubr.bf16.gmra.mxu0 %v1471
      %v1517 = vpop.f32.mrf.mxu0
      %v1518 = vadd.f32 0.0, %v1517
      %v1519 = vpop.f32.mrf.mxu0
      %v1520 = vadd.f32 0.0, %v1519
      %v1521 = vpop.f32.mrf.mxu0
      %v1522 = vpop.f32.mrf.mxu0
      %1523 = vdwg.mxu0
      %1524 = vmatprep.subr.bf16.mxu0 0
      %1525 = vmatpush1.bf16.msra.mxu0 0
      %1526 = vmatprep.subr.bf16.mxu0 0
      %1527 = vmatpush1.bf16.msra.mxu0 0
      %1528 = vmatprep.subr.bf16.mxu0 0
      %1529 = vmatpush1.bf16.msra.mxu0 0
      %1530 = vmatprep.subr.bf16.mxu0 0
      %1531 = vmatpush1.bf16.msra.mxu0 0
      %1532 = vmatprep.subr.bf16.mxu0 0
      %1533 = vmatpush1.bf16.msra.mxu0 0
      %1534 = vmatprep.subr.bf16.mxu0 0
      %1535 = vmatpush1.bf16.msra.mxu0 0
      %1536 = vmatprep.subr.bf16.mxu0 0
      %1537 = vmatpush1.bf16.msra.mxu0 0
      %1538 = vmatprep.subr.bf16.mxu0 0
      %1539 = vmatpush1.bf16.msra.mxu0 %v1481
      %1540 = vmatprep.subr.bf16.mxu0 0
      %1541 = vmatpush2.bf16.msra.mxu0 0
      %1542 = vmatprep.subr.bf16.mxu0 0
      %1543 = vmatpush2.bf16.msra.mxu0 0
      %1544 = vmatprep.subr.bf16.mxu0 0
      %1545 = vmatpush2.bf16.msra.mxu0 0
      %1546 = vmatprep.subr.bf16.mxu0 0
      %1547 = vmatpush2.bf16.msra.mxu0 0
      %1548 = vmatprep.subr.bf16.mxu0 0
      %1549 = vmatpush2.bf16.msra.mxu0 0
      %1550 = vmatprep.subr.bf16.mxu0 0
      %1551 = vmatpush2.bf16.msra.mxu0 0
      %1552 = vmatprep.subr.bf16.mxu0 0
      %1553 = vmatpush2.bf16.msra.mxu0 0
      %1554 = vmatprep.subr.bf16.mxu0 0
      %1555 = vmatpush2.bf16.msra.mxu0 0
      %1556 = vmatprep.mubr.bf16.mxu0 0
      %1557 = vmatmul.mubr.bf16.gmra.mxu0 %v1471
      %v1558 = vpop.f32.mrf.mxu0
      %v1559 = vadd.f32 0.0, %v1558
      %v1560 = vpop.f32.mrf.mxu0
      %v1561 = vpop.f32.mrf.mxu0
      %v1562 = vpop.f32.mrf.mxu0
      %1563 = vdwg.mxu0
      %v1565 = vsel %vm1469, %v1448, 0
      %v1568 = vsel %vm1473, %v1458, 0
      %v1571 = vsel %vm1473, %v1459, 0
      %v1574 = vsel %vm1473, %v1460, 0
      %1576 = vmatprep.subr.bf16.mxu0 0
      %1577 = vmatpush1.bf16.msra.mxu0 0
      %1578 = vmatprep.subr.bf16.mxu0 0
      %1579 = vmatpush1.bf16.msra.mxu0 0
      %1580 = vmatprep.subr.bf16.mxu0 0
      %1581 = vmatpush1.bf16.msra.mxu0 0
      %1582 = vmatprep.subr.bf16.mxu0 0
      %1583 = vmatpush1.bf16.msra.mxu0 0
      %1584 = vmatprep.subr.bf16.mxu0 0
      %1585 = vmatpush1.bf16.msra.mxu0 0
      %1586 = vmatprep.subr.bf16.mxu0 0
      %1587 = vmatpush1.bf16.msra.mxu0 0
      %1588 = vmatprep.subr.bf16.mxu0 0
      %1589 = vmatpush1.bf16.msra.mxu0 0
      %1590 = vmatprep.subr.bf16.mxu0 %v1571
      %1591 = vmatpush1.bf16.msra.mxu0 %v1568
      %1592 = vmatprep.subr.bf16.mxu0 0
      %1593 = vmatpush2.bf16.msra.mxu0 0
      %1594 = vmatprep.subr.bf16.mxu0 0
      %1595 = vmatpush2.bf16.msra.mxu0 0
      %1596 = vmatprep.subr.bf16.mxu0 0
      %1597 = vmatpush2.bf16.msra.mxu0 0
      %1598 = vmatprep.subr.bf16.mxu0 0
      %1599 = vmatpush2.bf16.msra.mxu0 0
      %1600 = vmatprep.subr.bf16.mxu0 0
      %1601 = vmatpush2.bf16.msra.mxu0 0
      %1602 = vmatprep.subr.bf16.mxu0 0
      %1603 = vmatpush2.bf16.msra.mxu0 0
      %1604 = vmatprep.subr.bf16.mxu0 0
      %1605 = vmatpush2.bf16.msra.mxu0 0
      %1606 = vmatprep.subr.bf16.mxu0 0
      %1607 = vmatpush2.bf16.msra.mxu0 0
      %1608 = vmatprep.mubr.bf16.mxu0 0
      %1609 = vmatmul.mubr.bf16.gmra.mxu0 %v1565
      %v1610 = vpop.f32.mrf.mxu0
      %v1611 = vadd.f32 %v1518, %v1610
      %v1612 = vpop.f32.mrf.mxu0
      %v1613 = vadd.f32 %v1520, %v1612
      %v1614 = vpop.f32.mrf.mxu0
      %v1615 = vpop.f32.mrf.mxu0
      %1616 = vdwg.mxu0
      %1617 = vmatprep.subr.bf16.mxu0 0
      %1618 = vmatpush1.bf16.msra.mxu0 0
      %1619 = vmatprep.subr.bf16.mxu0 0
      %1620 = vmatpush1.bf16.msra.mxu0 0
      %1621 = vmatprep.subr.bf16.mxu0 0
      %1622 = vmatpush1.bf16.msra.mxu0 0
      %1623 = vmatprep.subr.bf16.mxu0 0
      %1624 = vmatpush1.bf16.msra.mxu0 0
      %1625 = vmatprep.subr.bf16.mxu0 0
      %1626 = vmatpush1.bf16.msra.mxu0 0
      %1627 = vmatprep.subr.bf16.mxu0 0
      %1628 = vmatpush1.bf16.msra.mxu0 0
      %1629 = vmatprep.subr.bf16.mxu0 0
      %1630 = vmatpush1.bf16.msra.mxu0 0
      %1631 = vmatprep.subr.bf16.mxu0 0
      %1632 = vmatpush1.bf16.msra.mxu0 %v1574
      %1633 = vmatprep.subr.bf16.mxu0 0
      %1634 = vmatpush2.bf16.msra.mxu0 0
      %1635 = vmatprep.subr.bf16.mxu0 0
      %1636 = vmatpush2.bf16.msra.mxu0 0
      %1637 = vmatprep.subr.bf16.mxu0 0
      %1638 = vmatpush2.bf16.msra.mxu0 0
      %1639 = vmatprep.subr.bf16.mxu0 0
      %1640 = vmatpush2.bf16.msra.mxu0 0
      %1641 = vmatprep.subr.bf16.mxu0 0
      %1642 = vmatpush2.bf16.msra.mxu0 0
      %1643 = vmatprep.subr.bf16.mxu0 0
      %1644 = vmatpush2.bf16.msra.mxu0 0
      %1645 = vmatprep.subr.bf16.mxu0 0
      %1646 = vmatpush2.bf16.msra.mxu0 0
      %1647 = vmatprep.subr.bf16.mxu0 0
      %1648 = vmatpush2.bf16.msra.mxu0 0
      %1649 = vmatprep.mubr.bf16.mxu0 0
      %1650 = vmatmul.mubr.bf16.gmra.mxu0 %v1565
      %v1651 = vpop.f32.mrf.mxu0
      %v1652 = vadd.f32 %v1559, %v1651
      %v1653 = vpop.f32.mrf.mxu0
      %v1654 = vpop.f32.mrf.mxu0
      %v1655 = vpop.f32.mrf.mxu0
      %1656 = vdwg.mxu0
      %s1657 = scalar_lea.vmem %s3, 8
      %v1658 = vld [vmem:[%s1657] sm:$0xf]
      %1659 = vrot.lane.b32.xlu0 %v1458, 126
      %v1660 = vpop.permute.xlu0 %1659
      %1661 = vrot.lane.b32.xlu0 %v1459, 126
      %v1662 = vpop.permute.xlu0 %1661
      %1663 = vrot.lane.b32.xlu0 %v1460, 126
      %v1664 = vpop.permute.xlu0 %1663
      %v1665 = vsel %vm551, %v1660, %v1662
      %v1666 = vsel %vm551, %v1662, %v1664
      %v1668 = vsel %vm1469, %v1658, 0
      %v1671 = vsel %vm1473, %v1665, 0
      %v1674 = vsel %vm1473, %v1666, 0
      %v1677 = vsel %vm1473, %v1664, 0
      %1679 = vmatprep.subr.bf16.mxu0 0
      %1680 = vmatpush1.bf16.msra.mxu0 0
      %1681 = vmatprep.subr.bf16.mxu0 0
      %1682 = vmatpush1.bf16.msra.mxu0 0
      %1683 = vmatprep.subr.bf16.mxu0 0
      %1684 = vmatpush1.bf16.msra.mxu0 0
      %1685 = vmatprep.subr.bf16.mxu0 0
      %1686 = vmatpush1.bf16.msra.mxu0 0
      %1687 = vmatprep.subr.bf16.mxu0 0
      %1688 = vmatpush1.bf16.msra.mxu0 0
      %1689 = vmatprep.subr.bf16.mxu0 0
      %1690 = vmatpush1.bf16.msra.mxu0 0
      %1691 = vmatprep.subr.bf16.mxu0 0
      %1692 = vmatpush1.bf16.msra.mxu0 0
      %1693 = vmatprep.subr.bf16.mxu0 %v1674
      %1694 = vmatpush1.bf16.msra.mxu0 %v1671
      %1695 = vmatprep.subr.bf16.mxu0 0
      %1696 = vmatpush2.bf16.msra.mxu0 0
      %1697 = vmatprep.subr.bf16.mxu0 0
      %1698 = vmatpush2.bf16.msra.mxu0 0
      %1699 = vmatprep.subr.bf16.mxu0 0
      %1700 = vmatpush2.bf16.msra.mxu0 0
      %1701 = vmatprep.subr.bf16.mxu0 0
      %1702 = vmatpush2.bf16.msra.mxu0 0
      %1703 = vmatprep.subr.bf16.mxu0 0
      %1704 = vmatpush2.bf16.msra.mxu0 0
      %1705 = vmatprep.subr.bf16.mxu0 0
      %1706 = vmatpush2.bf16.msra.mxu0 0
      %1707 = vmatprep.subr.bf16.mxu0 0
      %1708 = vmatpush2.bf16.msra.mxu0 0
      %1709 = vmatprep.subr.bf16.mxu0 0
      %1710 = vmatpush2.bf16.msra.mxu0 0
      %1711 = vmatprep.mubr.bf16.mxu0 0
      %1712 = vmatmul.mubr.bf16.gmra.mxu0 %v1668
      %v1713 = vpop.f32.mrf.mxu0
      %v1714 = vadd.f32 0.0, %v1713
      %v1715 = vpop.f32.mrf.mxu0
      %v1716 = vadd.f32 0.0, %v1715
      %v1717 = vpop.f32.mrf.mxu0
      %v1718 = vpop.f32.mrf.mxu0
      %1719 = vdwg.mxu0
      %1720 = vmatprep.subr.bf16.mxu0 0
      %1721 = vmatpush1.bf16.msra.mxu0 0
      %1722 = vmatprep.subr.bf16.mxu0 0
      %1723 = vmatpush1.bf16.msra.mxu0 0
      %1724 = vmatprep.subr.bf16.mxu0 0
      %1725 = vmatpush1.bf16.msra.mxu0 0
      %1726 = vmatprep.subr.bf16.mxu0 0
      %1727 = vmatpush1.bf16.msra.mxu0 0
      %1728 = vmatprep.subr.bf16.mxu0 0
      %1729 = vmatpush1.bf16.msra.mxu0 0
      %1730 = vmatprep.subr.bf16.mxu0 0
      %1731 = vmatpush1.bf16.msra.mxu0 0
      %1732 = vmatprep.subr.bf16.mxu0 0
      %1733 = vmatpush1.bf16.msra.mxu0 0
      %1734 = vmatprep.subr.bf16.mxu0 0
      %1735 = vmatpush1.bf16.msra.mxu0 %v1677
      %1736 = vmatprep.subr.bf16.mxu0 0
      %1737 = vmatpush2.bf16.msra.mxu0 0
      %1738 = vmatprep.subr.bf16.mxu0 0
      %1739 = vmatpush2.bf16.msra.mxu0 0
      %1740 = vmatprep.subr.bf16.mxu0 0
      %1741 = vmatpush2.bf16.msra.mxu0 0
      %1742 = vmatprep.subr.bf16.mxu0 0
      %1743 = vmatpush2.bf16.msra.mxu0 0
      %1744 = vmatprep.subr.bf16.mxu0 0
      %1745 = vmatpush2.bf16.msra.mxu0 0
      %1746 = vmatprep.subr.bf16.mxu0 0
      %1747 = vmatpush2.bf16.msra.mxu0 0
      %1748 = vmatprep.subr.bf16.mxu0 0
      %1749 = vmatpush2.bf16.msra.mxu0 0
      %1750 = vmatprep.subr.bf16.mxu0 0
      %1751 = vmatpush2.bf16.msra.mxu0 0
      %1752 = vmatprep.mubr.bf16.mxu0 0
      %1753 = vmatmul.mubr.bf16.gmra.mxu0 %v1668
      %v1754 = vpop.f32.mrf.mxu0
      %v1755 = vadd.f32 0.0, %v1754
      %v1756 = vpop.f32.mrf.mxu0
      %v1757 = vpop.f32.mrf.mxu0
      %v1758 = vpop.f32.mrf.mxu0
      %1759 = vdwg.mxu0
      %v1760 = vadd.f32 %v1611, %v1714
      %v1761 = vadd.f32 %v1613, %v1716
      %v1762 = vadd.f32 %v1652, %v1755
      %s1763 = scalar_lea.vmem %s3, 12
      %v1764 = vld [vmem:[%s1763] sm:$0xf]
      %1765 = vrot.lane.b32.xlu0 %v1458, 110
      %v1766 = vpop.permute.xlu0 %1765
      %1767 = vrot.lane.b32.xlu0 %v1459, 110
      %v1768 = vpop.permute.xlu0 %1767
      %1769 = vrot.lane.b32.xlu0 %v1460, 110
      %v1770 = vpop.permute.xlu0 %1769
      %v1771 = vsel %vm676, %v1766, %v1768
      %v1772 = vsel %vm676, %v1768, %v1770
      %v1774 = vsel %vm1469, %v1764, 0
      %v1777 = vsel %vm1473, %v1771, 0
      %v1780 = vsel %vm1473, %v1772, 0
      %v1783 = vsel %vm1473, %v1770, 0
      %1785 = vmatprep.subr.bf16.mxu0 0
      %1786 = vmatpush1.bf16.msra.mxu0 0
      %1787 = vmatprep.subr.bf16.mxu0 0
      %1788 = vmatpush1.bf16.msra.mxu0 0
      %1789 = vmatprep.subr.bf16.mxu0 0
      %1790 = vmatpush1.bf16.msra.mxu0 0
      %1791 = vmatprep.subr.bf16.mxu0 0
      %1792 = vmatpush1.bf16.msra.mxu0 0
      %1793 = vmatprep.subr.bf16.mxu0 0
      %1794 = vmatpush1.bf16.msra.mxu0 0
      %1795 = vmatprep.subr.bf16.mxu0 0
      %1796 = vmatpush1.bf16.msra.mxu0 0
      %1797 = vmatprep.subr.bf16.mxu0 0
      %1798 = vmatpush1.bf16.msra.mxu0 0
      %1799 = vmatprep.subr.bf16.mxu0 %v1780
      %1800 = vmatpush1.bf16.msra.mxu0 %v1777
      %1801 = vmatprep.subr.bf16.mxu0 0
      %1802 = vmatpush2.bf16.msra.mxu0 0
      %1803 = vmatprep.subr.bf16.mxu0 0
      %1804 = vmatpush2.bf16.msra.mxu0 0
      %1805 = vmatprep.subr.bf16.mxu0 0
      %1806 = vmatpush2.bf16.msra.mxu0 0
      %1807 = vmatprep.subr.bf16.mxu0 0
      %1808 = vmatpush2.bf16.msra.mxu0 0
      %1809 = vmatprep.subr.bf16.mxu0 0
      %1810 = vmatpush2.bf16.msra.mxu0 0
      %1811 = vmatprep.subr.bf16.mxu0 0
      %1812 = vmatpush2.bf16.msra.mxu0 0
      %1813 = vmatprep.subr.bf16.mxu0 0
      %1814 = vmatpush2.bf16.msra.mxu0 0
      %1815 = vmatprep.subr.bf16.mxu0 0
      %1816 = vmatpush2.bf16.msra.mxu0 0
      %1817 = vmatprep.mubr.bf16.mxu0 0
      %1818 = vmatmul.mubr.bf16.gmra.mxu0 %v1774
      %v1819 = vpop.f32.mrf.mxu0
      %v1820 = vadd.f32 0.0, %v1819
      %v1821 = vpop.f32.mrf.mxu0
      %v1822 = vadd.f32 0.0, %v1821
      %v1823 = vpop.f32.mrf.mxu0
      %v1824 = vpop.f32.mrf.mxu0
      %1825 = vdwg.mxu0
      %1826 = vmatprep.subr.bf16.mxu0 0
      %1827 = vmatpush1.bf16.msra.mxu0 0
      %1828 = vmatprep.subr.bf16.mxu0 0
      %1829 = vmatpush1.bf16.msra.mxu0 0
      %1830 = vmatprep.subr.bf16.mxu0 0
      %1831 = vmatpush1.bf16.msra.mxu0 0
      %1832 = vmatprep.subr.bf16.mxu0 0
      %1833 = vmatpush1.bf16.msra.mxu0 0
      %1834 = vmatprep.subr.bf16.mxu0 0
      %1835 = vmatpush1.bf16.msra.mxu0 0
      %1836 = vmatprep.subr.bf16.mxu0 0
      %1837 = vmatpush1.bf16.msra.mxu0 0
      %1838 = vmatprep.subr.bf16.mxu0 0
      %1839 = vmatpush1.bf16.msra.mxu0 0
      %1840 = vmatprep.subr.bf16.mxu0 0
      %1841 = vmatpush1.bf16.msra.mxu0 %v1783
      %1842 = vmatprep.subr.bf16.mxu0 0
      %1843 = vmatpush2.bf16.msra.mxu0 0
      %1844 = vmatprep.subr.bf16.mxu0 0
      %1845 = vmatpush2.bf16.msra.mxu0 0
      %1846 = vmatprep.subr.bf16.mxu0 0
      %1847 = vmatpush2.bf16.msra.mxu0 0
      %1848 = vmatprep.subr.bf16.mxu0 0
      %1849 = vmatpush2.bf16.msra.mxu0 0
      %1850 = vmatprep.subr.bf16.mxu0 0
      %1851 = vmatpush2.bf16.msra.mxu0 0
      %1852 = vmatprep.subr.bf16.mxu0 0
      %1853 = vmatpush2.bf16.msra.mxu0 0
      %1854 = vmatprep.subr.bf16.mxu0 0
      %1855 = vmatpush2.bf16.msra.mxu0 0
      %1856 = vmatprep.subr.bf16.mxu0 0
      %1857 = vmatpush2.bf16.msra.mxu0 0
      %1858 = vmatprep.mubr.bf16.mxu0 0
      %1859 = vmatmul.mubr.bf16.gmra.mxu0 %v1774
      %v1860 = vpop.f32.mrf.mxu0
      %v1861 = vadd.f32 0.0, %v1860
      %v1862 = vpop.f32.mrf.mxu0
      %v1863 = vpop.f32.mrf.mxu0
      %v1864 = vpop.f32.mrf.mxu0
      %1865 = vdwg.mxu0
      %v1866 = vadd.f32 %v1760, %v1820
      %v1867 = vadd.f32 %v1761, %v1822
      %v1868 = vadd.f32 %v1762, %v1861
      %s1869 = scalar_lea.vmem %s3, 16
      %v1870 = vld [vmem:[%s1869] sm:$0xf]
      %1871 = vrot.lane.b32.xlu0 %v1458, 109
      %v1872 = vpop.permute.xlu0 %1871
      %1873 = vrot.lane.b32.xlu0 %v1459, 109
      %v1874 = vpop.permute.xlu0 %1873
      %1875 = vrot.lane.b32.xlu0 %v1460, 109
      %v1876 = vpop.permute.xlu0 %1875
      %v1877 = vsel %vm801, %v1872, %v1874
      %v1878 = vsel %vm801, %v1874, %v1876
      %v1880 = vsel %vm1469, %v1870, 0
      %v1883 = vsel %vm1473, %v1877, 0
      %v1886 = vsel %vm1473, %v1878, 0
      %v1889 = vsel %vm1473, %v1876, 0
      %1891 = vmatprep.subr.bf16.mxu0 0
      %1892 = vmatpush1.bf16.msra.mxu0 0
      %1893 = vmatprep.subr.bf16.mxu0 0
      %1894 = vmatpush1.bf16.msra.mxu0 0
      %1895 = vmatprep.subr.bf16.mxu0 0
      %1896 = vmatpush1.bf16.msra.mxu0 0
      %1897 = vmatprep.subr.bf16.mxu0 0
      %1898 = vmatpush1.bf16.msra.mxu0 0
      %1899 = vmatprep.subr.bf16.mxu0 0
      %1900 = vmatpush1.bf16.msra.mxu0 0
      %1901 = vmatprep.subr.bf16.mxu0 0
      %1902 = vmatpush1.bf16.msra.mxu0 0
      %1903 = vmatprep.subr.bf16.mxu0 0
      %1904 = vmatpush1.bf16.msra.mxu0 0
      %1905 = vmatprep.subr.bf16.mxu0 %v1886
      %1906 = vmatpush1.bf16.msra.mxu0 %v1883
      %1907 = vmatprep.subr.bf16.mxu0 0
      %1908 = vmatpush2.bf16.msra.mxu0 0
      %1909 = vmatprep.subr.bf16.mxu0 0
      %1910 = vmatpush2.bf16.msra.mxu0 0
      %1911 = vmatprep.subr.bf16.mxu0 0
      %1912 = vmatpush2.bf16.msra.mxu0 0
      %1913 = vmatprep.subr.bf16.mxu0 0
      %1914 = vmatpush2.bf16.msra.mxu0 0
      %1915 = vmatprep.subr.bf16.mxu0 0
      %1916 = vmatpush2.bf16.msra.mxu0 0
      %1917 = vmatprep.subr.bf16.mxu0 0
      %1918 = vmatpush2.bf16.msra.mxu0 0
      %1919 = vmatprep.subr.bf16.mxu0 0
      %1920 = vmatpush2.bf16.msra.mxu0 0
      %1921 = vmatprep.subr.bf16.mxu0 0
      %1922 = vmatpush2.bf16.msra.mxu0 0
      %1923 = vmatprep.mubr.bf16.mxu0 0
      %1924 = vmatmul.mubr.bf16.gmra.mxu0 %v1880
      %v1925 = vpop.f32.mrf.mxu0
      %v1926 = vadd.f32 0.0, %v1925
      %v1927 = vpop.f32.mrf.mxu0
      %v1928 = vadd.f32 0.0, %v1927
      %v1929 = vpop.f32.mrf.mxu0
      %v1930 = vpop.f32.mrf.mxu0
      %1931 = vdwg.mxu0
      %1932 = vmatprep.subr.bf16.mxu0 0
      %1933 = vmatpush1.bf16.msra.mxu0 0
      %1934 = vmatprep.subr.bf16.mxu0 0
      %1935 = vmatpush1.bf16.msra.mxu0 0
      %1936 = vmatprep.subr.bf16.mxu0 0
      %1937 = vmatpush1.bf16.msra.mxu0 0
      %1938 = vmatprep.subr.bf16.mxu0 0
      %1939 = vmatpush1.bf16.msra.mxu0 0
      %1940 = vmatprep.subr.bf16.mxu0 0
      %1941 = vmatpush1.bf16.msra.mxu0 0
      %1942 = vmatprep.subr.bf16.mxu0 0
      %1943 = vmatpush1.bf16.msra.mxu0 0
      %1944 = vmatprep.subr.bf16.mxu0 0
      %1945 = vmatpush1.bf16.msra.mxu0 0
      %1946 = vmatprep.subr.bf16.mxu0 0
      %1947 = vmatpush1.bf16.msra.mxu0 %v1889
      %1948 = vmatprep.subr.bf16.mxu0 0
      %1949 = vmatpush2.bf16.msra.mxu0 0
      %1950 = vmatprep.subr.bf16.mxu0 0
      %1951 = vmatpush2.bf16.msra.mxu0 0
      %1952 = vmatprep.subr.bf16.mxu0 0
      %1953 = vmatpush2.bf16.msra.mxu0 0
      %1954 = vmatprep.subr.bf16.mxu0 0
      %1955 = vmatpush2.bf16.msra.mxu0 0
      %1956 = vmatprep.subr.bf16.mxu0 0
      %1957 = vmatpush2.bf16.msra.mxu0 0
      %1958 = vmatprep.subr.bf16.mxu0 0
      %1959 = vmatpush2.bf16.msra.mxu0 0
      %1960 = vmatprep.subr.bf16.mxu0 0
      %1961 = vmatpush2.bf16.msra.mxu0 0
      %1962 = vmatprep.subr.bf16.mxu0 0
      %1963 = vmatpush2.bf16.msra.mxu0 0
      %1964 = vmatprep.mubr.bf16.mxu0 0
      %1965 = vmatmul.mubr.bf16.gmra.mxu0 %v1880
      %v1966 = vpop.f32.mrf.mxu0
      %v1967 = vadd.f32 0.0, %v1966
      %v1968 = vpop.f32.mrf.mxu0
      %v1969 = vpop.f32.mrf.mxu0
      %v1970 = vpop.f32.mrf.mxu0
      %1971 = vdwg.mxu0
      %v1972 = vadd.f32 %v1866, %v1926
      %v1973 = vadd.f32 %v1867, %v1928
      %v1974 = vadd.f32 %v1868, %v1967
      %s1975 = scalar_lea.vmem %s3, 20
      %v1976 = vld [vmem:[%s1975] sm:$0xf]
      %1977 = vrot.lane.b32.xlu0 %v1458, 108
      %v1978 = vpop.permute.xlu0 %1977
      %1979 = vrot.lane.b32.xlu0 %v1459, 108
      %v1980 = vpop.permute.xlu0 %1979
      %1981 = vrot.lane.b32.xlu0 %v1460, 108
      %v1982 = vpop.permute.xlu0 %1981
      %v1983 = vsel %vm926, %v1978, %v1980
      %v1984 = vsel %vm926, %v1980, %v1982
      %v1986 = vsel %vm1469, %v1976, 0
      %v1989 = vsel %vm1473, %v1983, 0
      %v1992 = vsel %vm1473, %v1984, 0
      %v1995 = vsel %vm1473, %v1982, 0
      %1997 = vmatprep.subr.bf16.mxu0 0
      %1998 = vmatpush1.bf16.msra.mxu0 0
      %1999 = vmatprep.subr.bf16.mxu0 0
      %2000 = vmatpush1.bf16.msra.mxu0 0
      %2001 = vmatprep.subr.bf16.mxu0 0
      %2002 = vmatpush1.bf16.msra.mxu0 0
      %2003 = vmatprep.subr.bf16.mxu0 0
      %2004 = vmatpush1.bf16.msra.mxu0 0
      %2005 = vmatprep.subr.bf16.mxu0 0
      %2006 = vmatpush1.bf16.msra.mxu0 0
      %2007 = vmatprep.subr.bf16.mxu0 0
      %2008 = vmatpush1.bf16.msra.mxu0 0
      %2009 = vmatprep.subr.bf16.mxu0 0
      %2010 = vmatpush1.bf16.msra.mxu0 0
      %2011 = vmatprep.subr.bf16.mxu0 %v1992
      %2012 = vmatpush1.bf16.msra.mxu0 %v1989
      %2013 = vmatprep.subr.bf16.mxu0 0
      %2014 = vmatpush2.bf16.msra.mxu0 0
      %2015 = vmatprep.subr.bf16.mxu0 0
      %2016 = vmatpush2.bf16.msra.mxu0 0
      %2017 = vmatprep.subr.bf16.mxu0 0
      %2018 = vmatpush2.bf16.msra.mxu0 0
      %2019 = vmatprep.subr.bf16.mxu0 0
      %2020 = vmatpush2.bf16.msra.mxu0 0
      %2021 = vmatprep.subr.bf16.mxu0 0
      %2022 = vmatpush2.bf16.msra.mxu0 0
      %2023 = vmatprep.subr.bf16.mxu0 0
      %2024 = vmatpush2.bf16.msra.mxu0 0
      %2025 = vmatprep.subr.bf16.mxu0 0
      %2026 = vmatpush2.bf16.msra.mxu0 0
      %2027 = vmatprep.subr.bf16.mxu0 0
      %2028 = vmatpush2.bf16.msra.mxu0 0
      %2029 = vmatprep.mubr.bf16.mxu0 0
      %2030 = vmatmul.mubr.bf16.gmra.mxu0 %v1986
      %v2031 = vpop.f32.mrf.mxu0
      %v2032 = vadd.f32 0.0, %v2031
      %v2033 = vpop.f32.mrf.mxu0
      %v2034 = vadd.f32 0.0, %v2033
      %v2035 = vpop.f32.mrf.mxu0
      %v2036 = vpop.f32.mrf.mxu0
      %2037 = vdwg.mxu0
      %2038 = vmatprep.subr.bf16.mxu0 0
      %2039 = vmatpush1.bf16.msra.mxu0 0
      %2040 = vmatprep.subr.bf16.mxu0 0
      %2041 = vmatpush1.bf16.msra.mxu0 0
      %2042 = vmatprep.subr.bf16.mxu0 0
      %2043 = vmatpush1.bf16.msra.mxu0 0
      %2044 = vmatprep.subr.bf16.mxu0 0
      %2045 = vmatpush1.bf16.msra.mxu0 0
      %2046 = vmatprep.subr.bf16.mxu0 0
      %2047 = vmatpush1.bf16.msra.mxu0 0
      %2048 = vmatprep.subr.bf16.mxu0 0
      %2049 = vmatpush1.bf16.msra.mxu0 0
      %2050 = vmatprep.subr.bf16.mxu0 0
      %2051 = vmatpush1.bf16.msra.mxu0 0
      %2052 = vmatprep.subr.bf16.mxu0 0
      %2053 = vmatpush1.bf16.msra.mxu0 %v1995
      %2054 = vmatprep.subr.bf16.mxu0 0
      %2055 = vmatpush2.bf16.msra.mxu0 0
      %2056 = vmatprep.subr.bf16.mxu0 0
      %2057 = vmatpush2.bf16.msra.mxu0 0
      %2058 = vmatprep.subr.bf16.mxu0 0
      %2059 = vmatpush2.bf16.msra.mxu0 0
      %2060 = vmatprep.subr.bf16.mxu0 0
      %2061 = vmatpush2.bf16.msra.mxu0 0
      %2062 = vmatprep.subr.bf16.mxu0 0
      %2063 = vmatpush2.bf16.msra.mxu0 0
      %2064 = vmatprep.subr.bf16.mxu0 0
      %2065 = vmatpush2.bf16.msra.mxu0 0
      %2066 = vmatprep.subr.bf16.mxu0 0
      %2067 = vmatpush2.bf16.msra.mxu0 0
      %2068 = vmatprep.subr.bf16.mxu0 0
      %2069 = vmatpush2.bf16.msra.mxu0 0
      %2070 = vmatprep.mubr.bf16.mxu0 0
      %2071 = vmatmul.mubr.bf16.gmra.mxu0 %v1986
      %v2072 = vpop.f32.mrf.mxu0
      %v2073 = vadd.f32 0.0, %v2072
      %v2074 = vpop.f32.mrf.mxu0
      %v2075 = vpop.f32.mrf.mxu0
      %v2076 = vpop.f32.mrf.mxu0
      %2077 = vdwg.mxu0
      %v2078 = vadd.f32 %v1972, %v2032
      %v2079 = vadd.f32 %v1973, %v2034
      %v2080 = vadd.f32 %v1974, %v2073
      %s2081 = scalar_lea.vmem %s3, 24
      %v2082 = vld [vmem:[%s2081] sm:$0xf]
      %2083 = vrot.lane.b32.xlu0 %v1458, 92
      %v2084 = vpop.permute.xlu0 %2083
      %2085 = vrot.lane.b32.xlu0 %v1459, 92
      %v2086 = vpop.permute.xlu0 %2085
      %2087 = vrot.lane.b32.xlu0 %v1460, 92
      %v2088 = vpop.permute.xlu0 %2087
      %v2089 = vsel %vm1051, %v2084, %v2086
      %v2090 = vsel %vm1051, %v2086, %v2088
      %v2092 = vsel %vm1469, %v2082, 0
      %v2095 = vsel %vm1473, %v2089, 0
      %v2098 = vsel %vm1473, %v2090, 0
      %v2101 = vsel %vm1473, %v2088, 0
      %2103 = vmatprep.subr.bf16.mxu0 0
      %2104 = vmatpush1.bf16.msra.mxu0 0
      %2105 = vmatprep.subr.bf16.mxu0 0
      %2106 = vmatpush1.bf16.msra.mxu0 0
      %2107 = vmatprep.subr.bf16.mxu0 0
      %2108 = vmatpush1.bf16.msra.mxu0 0
      %2109 = vmatprep.subr.bf16.mxu0 0
      %2110 = vmatpush1.bf16.msra.mxu0 0
      %2111 = vmatprep.subr.bf16.mxu0 0
      %2112 = vmatpush1.bf16.msra.mxu0 0
      %2113 = vmatprep.subr.bf16.mxu0 0
      %2114 = vmatpush1.bf16.msra.mxu0 0
      %2115 = vmatprep.subr.bf16.mxu0 0
      %2116 = vmatpush1.bf16.msra.mxu0 0
      %2117 = vmatprep.subr.bf16.mxu0 %v2098
      %2118 = vmatpush1.bf16.msra.mxu0 %v2095
      %2119 = vmatprep.subr.bf16.mxu0 0
      %2120 = vmatpush2.bf16.msra.mxu0 0
      %2121 = vmatprep.subr.bf16.mxu0 0
      %2122 = vmatpush2.bf16.msra.mxu0 0
      %2123 = vmatprep.subr.bf16.mxu0 0
      %2124 = vmatpush2.bf16.msra.mxu0 0
      %2125 = vmatprep.subr.bf16.mxu0 0
      %2126 = vmatpush2.bf16.msra.mxu0 0
      %2127 = vmatprep.subr.bf16.mxu0 0
      %2128 = vmatpush2.bf16.msra.mxu0 0
      %2129 = vmatprep.subr.bf16.mxu0 0
      %2130 = vmatpush2.bf16.msra.mxu0 0
      %2131 = vmatprep.subr.bf16.mxu0 0
      %2132 = vmatpush2.bf16.msra.mxu0 0
      %2133 = vmatprep.subr.bf16.mxu0 0
      %2134 = vmatpush2.bf16.msra.mxu0 0
      %2135 = vmatprep.mubr.bf16.mxu0 0
      %2136 = vmatmul.mubr.bf16.gmra.mxu0 %v2092
      %v2137 = vpop.f32.mrf.mxu0
      %v2138 = vadd.f32 0.0, %v2137
      %v2139 = vpop.f32.mrf.mxu0
      %v2140 = vadd.f32 0.0, %v2139
      %v2141 = vpop.f32.mrf.mxu0
      %v2142 = vpop.f32.mrf.mxu0
      %2143 = vdwg.mxu0
      %2144 = vmatprep.subr.bf16.mxu0 0
      %2145 = vmatpush1.bf16.msra.mxu0 0
      %2146 = vmatprep.subr.bf16.mxu0 0
      %2147 = vmatpush1.bf16.msra.mxu0 0
      %2148 = vmatprep.subr.bf16.mxu0 0
      %2149 = vmatpush1.bf16.msra.mxu0 0
      %2150 = vmatprep.subr.bf16.mxu0 0
      %2151 = vmatpush1.bf16.msra.mxu0 0
      %2152 = vmatprep.subr.bf16.mxu0 0
      %2153 = vmatpush1.bf16.msra.mxu0 0
      %2154 = vmatprep.subr.bf16.mxu0 0
      %2155 = vmatpush1.bf16.msra.mxu0 0
      %2156 = vmatprep.subr.bf16.mxu0 0
      %2157 = vmatpush1.bf16.msra.mxu0 0
      %2158 = vmatprep.subr.bf16.mxu0 0
      %2159 = vmatpush1.bf16.msra.mxu0 %v2101
      %2160 = vmatprep.subr.bf16.mxu0 0
      %2161 = vmatpush2.bf16.msra.mxu0 0
      %2162 = vmatprep.subr.bf16.mxu0 0
      %2163 = vmatpush2.bf16.msra.mxu0 0
      %2164 = vmatprep.subr.bf16.mxu0 0
      %2165 = vmatpush2.bf16.msra.mxu0 0
      %2166 = vmatprep.subr.bf16.mxu0 0
      %2167 = vmatpush2.bf16.msra.mxu0 0
      %2168 = vmatprep.subr.bf16.mxu0 0
      %2169 = vmatpush2.bf16.msra.mxu0 0
      %2170 = vmatprep.subr.bf16.mxu0 0
      %2171 = vmatpush2.bf16.msra.mxu0 0
      %2172 = vmatprep.subr.bf16.mxu0 0
      %2173 = vmatpush2.bf16.msra.mxu0 0
      %2174 = vmatprep.subr.bf16.mxu0 0
      %2175 = vmatpush2.bf16.msra.mxu0 0
      %2176 = vmatprep.mubr.bf16.mxu0 0
      %2177 = vmatmul.mubr.bf16.gmra.mxu0 %v2092
      %v2178 = vpop.f32.mrf.mxu0
      %v2179 = vadd.f32 0.0, %v2178
      %v2180 = vpop.f32.mrf.mxu0
      %v2181 = vpop.f32.mrf.mxu0
      %v2182 = vpop.f32.mrf.mxu0
      %2183 = vdwg.mxu0
      %v2184 = vadd.f32 %v2078, %v2138
      %v2185 = vadd.f32 %v2079, %v2140
      %v2186 = vadd.f32 %v2080, %v2179
      %s2187 = scalar_lea.vmem %s3, 28
      %v2188 = vld [vmem:[%s2187] sm:$0xf]
      %2189 = vrot.lane.b32.xlu0 %v1458, 91
      %v2190 = vpop.permute.xlu0 %2189
      %2191 = vrot.lane.b32.xlu0 %v1459, 91
      %v2192 = vpop.permute.xlu0 %2191
      %2193 = vrot.lane.b32.xlu0 %v1460, 91
      %v2194 = vpop.permute.xlu0 %2193
      %v2195 = vsel %vm1176, %v2190, %v2192
      %v2196 = vsel %vm1176, %v2192, %v2194
      %v2198 = vsel %vm1469, %v2188, 0
      %v2201 = vsel %vm1473, %v2195, 0
      %v2204 = vsel %vm1473, %v2196, 0
      %v2207 = vsel %vm1473, %v2194, 0
      %2209 = vmatprep.subr.bf16.mxu0 0
      %2210 = vmatpush1.bf16.msra.mxu0 0
      %2211 = vmatprep.subr.bf16.mxu0 0
      %2212 = vmatpush1.bf16.msra.mxu0 0
      %2213 = vmatprep.subr.bf16.mxu0 0
      %2214 = vmatpush1.bf16.msra.mxu0 0
      %2215 = vmatprep.subr.bf16.mxu0 0
      %2216 = vmatpush1.bf16.msra.mxu0 0
      %2217 = vmatprep.subr.bf16.mxu0 0
      %2218 = vmatpush1.bf16.msra.mxu0 0
      %2219 = vmatprep.subr.bf16.mxu0 0
      %2220 = vmatpush1.bf16.msra.mxu0 0
      %2221 = vmatprep.subr.bf16.mxu0 0
      %2222 = vmatpush1.bf16.msra.mxu0 0
      %2223 = vmatprep.subr.bf16.mxu0 %v2204
      %2224 = vmatpush1.bf16.msra.mxu0 %v2201
      %2225 = vmatprep.subr.bf16.mxu0 0
      %2226 = vmatpush2.bf16.msra.mxu0 0
      %2227 = vmatprep.subr.bf16.mxu0 0
      %2228 = vmatpush2.bf16.msra.mxu0 0
      %2229 = vmatprep.subr.bf16.mxu0 0
      %2230 = vmatpush2.bf16.msra.mxu0 0
      %2231 = vmatprep.subr.bf16.mxu0 0
      %2232 = vmatpush2.bf16.msra.mxu0 0
      %2233 = vmatprep.subr.bf16.mxu0 0
      %2234 = vmatpush2.bf16.msra.mxu0 0
      %2235 = vmatprep.subr.bf16.mxu0 0
      %2236 = vmatpush2.bf16.msra.mxu0 0
      %2237 = vmatprep.subr.bf16.mxu0 0
      %2238 = vmatpush2.bf16.msra.mxu0 0
      %2239 = vmatprep.subr.bf16.mxu0 0
      %2240 = vmatpush2.bf16.msra.mxu0 0
      %2241 = vmatprep.mubr.bf16.mxu0 0
      %2242 = vmatmul.mubr.bf16.gmra.mxu0 %v2198
      %v2243 = vpop.f32.mrf.mxu0
      %v2244 = vadd.f32 0.0, %v2243
      %v2245 = vpop.f32.mrf.mxu0
      %v2246 = vadd.f32 0.0, %v2245
      %v2247 = vpop.f32.mrf.mxu0
      %v2248 = vpop.f32.mrf.mxu0
      %2249 = vdwg.mxu0
      %2250 = vmatprep.subr.bf16.mxu0 0
      %2251 = vmatpush1.bf16.msra.mxu0 0
      %2252 = vmatprep.subr.bf16.mxu0 0
      %2253 = vmatpush1.bf16.msra.mxu0 0
      %2254 = vmatprep.subr.bf16.mxu0 0
      %2255 = vmatpush1.bf16.msra.mxu0 0
      %2256 = vmatprep.subr.bf16.mxu0 0
      %2257 = vmatpush1.bf16.msra.mxu0 0
      %2258 = vmatprep.subr.bf16.mxu0 0
      %2259 = vmatpush1.bf16.msra.mxu0 0
      %2260 = vmatprep.subr.bf16.mxu0 0
      %2261 = vmatpush1.bf16.msra.mxu0 0
      %2262 = vmatprep.subr.bf16.mxu0 0
      %2263 = vmatpush1.bf16.msra.mxu0 0
      %2264 = vmatprep.subr.bf16.mxu0 0
      %2265 = vmatpush1.bf16.msra.mxu0 %v2207
      %2266 = vmatprep.subr.bf16.mxu0 0
      %2267 = vmatpush2.bf16.msra.mxu0 0
      %2268 = vmatprep.subr.bf16.mxu0 0
      %2269 = vmatpush2.bf16.msra.mxu0 0
      %2270 = vmatprep.subr.bf16.mxu0 0
      %2271 = vmatpush2.bf16.msra.mxu0 0
      %2272 = vmatprep.subr.bf16.mxu0 0
      %2273 = vmatpush2.bf16.msra.mxu0 0
      %2274 = vmatprep.subr.bf16.mxu0 0
      %2275 = vmatpush2.bf16.msra.mxu0 0
      %2276 = vmatprep.subr.bf16.mxu0 0
      %2277 = vmatpush2.bf16.msra.mxu0 0
      %2278 = vmatprep.subr.bf16.mxu0 0
      %2279 = vmatpush2.bf16.msra.mxu0 0
      %2280 = vmatprep.subr.bf16.mxu0 0
      %2281 = vmatpush2.bf16.msra.mxu0 0
      %2282 = vmatprep.mubr.bf16.mxu0 0
      %2283 = vmatmul.mubr.bf16.gmra.mxu0 %v2198
      %v2284 = vpop.f32.mrf.mxu0
      %v2285 = vadd.f32 0.0, %v2284
      %v2286 = vpop.f32.mrf.mxu0
      %v2287 = vpop.f32.mrf.mxu0
      %v2288 = vpop.f32.mrf.mxu0
      %2289 = vdwg.mxu0
      %v2290 = vadd.f32 %v2184, %v2244
      %v2291 = vadd.f32 %v2185, %v2246
      %v2292 = vadd.f32 %v2186, %v2285
      %s2293 = scalar_lea.vmem %s3, 32
      %v2294 = vld [vmem:[%s2293] sm:$0xf]
      %2295 = vrot.lane.b32.xlu0 %v1458, 90
      %v2296 = vpop.permute.xlu0 %2295
      %2297 = vrot.lane.b32.xlu0 %v1459, 90
      %v2298 = vpop.permute.xlu0 %2297
      %2299 = vrot.lane.b32.xlu0 %v1460, 90
      %v2300 = vpop.permute.xlu0 %2299
      %v2301 = vsel %vm1301, %v2296, %v2298
      %v2302 = vsel %vm1301, %v2298, %v2300
      %v2304 = vsel %vm1469, %v2294, 0
      %v2307 = vsel %vm1473, %v2301, 0
      %v2310 = vsel %vm1473, %v2302, 0
      %v2313 = vsel %vm1473, %v2300, 0
      %2315 = vmatprep.subr.bf16.mxu0 0
      %2316 = vmatpush1.bf16.msra.mxu0 0
      %2317 = vmatprep.subr.bf16.mxu0 0
      %2318 = vmatpush1.bf16.msra.mxu0 0
      %2319 = vmatprep.subr.bf16.mxu0 0
      %2320 = vmatpush1.bf16.msra.mxu0 0
      %2321 = vmatprep.subr.bf16.mxu0 0
      %2322 = vmatpush1.bf16.msra.mxu0 0
      %2323 = vmatprep.subr.bf16.mxu0 0
      %2324 = vmatpush1.bf16.msra.mxu0 0
      %2325 = vmatprep.subr.bf16.mxu0 0
      %2326 = vmatpush1.bf16.msra.mxu0 0
      %2327 = vmatprep.subr.bf16.mxu0 0
      %2328 = vmatpush1.bf16.msra.mxu0 0
      %2329 = vmatprep.subr.bf16.mxu0 %v2310
      %2330 = vmatpush1.bf16.msra.mxu0 %v2307
      %2331 = vmatprep.subr.bf16.mxu0 0
      %2332 = vmatpush2.bf16.msra.mxu0 0
      %2333 = vmatprep.subr.bf16.mxu0 0
      %2334 = vmatpush2.bf16.msra.mxu0 0
      %2335 = vmatprep.subr.bf16.mxu0 0
      %2336 = vmatpush2.bf16.msra.mxu0 0
      %2337 = vmatprep.subr.bf16.mxu0 0
      %2338 = vmatpush2.bf16.msra.mxu0 0
      %2339 = vmatprep.subr.bf16.mxu0 0
      %2340 = vmatpush2.bf16.msra.mxu0 0
      %2341 = vmatprep.subr.bf16.mxu0 0
      %2342 = vmatpush2.bf16.msra.mxu0 0
      %2343 = vmatprep.subr.bf16.mxu0 0
      %2344 = vmatpush2.bf16.msra.mxu0 0
      %2345 = vmatprep.subr.bf16.mxu0 0
      %2346 = vmatpush2.bf16.msra.mxu0 0
      %2347 = vmatprep.mubr.bf16.mxu0 0
      %2348 = vmatmul.mubr.bf16.gmra.mxu0 %v2304
      %v2349 = vpop.f32.mrf.mxu0
      %v2350 = vadd.f32 0.0, %v2349
      %v2351 = vpop.f32.mrf.mxu0
      %v2352 = vadd.f32 0.0, %v2351
      %v2353 = vpop.f32.mrf.mxu0
      %v2354 = vpop.f32.mrf.mxu0
      %2355 = vdwg.mxu0
      %2356 = vmatprep.subr.bf16.mxu0 0
      %2357 = vmatpush1.bf16.msra.mxu0 0
      %2358 = vmatprep.subr.bf16.mxu0 0
      %2359 = vmatpush1.bf16.msra.mxu0 0
      %2360 = vmatprep.subr.bf16.mxu0 0
      %2361 = vmatpush1.bf16.msra.mxu0 0
      %2362 = vmatprep.subr.bf16.mxu0 0
      %2363 = vmatpush1.bf16.msra.mxu0 0
      %2364 = vmatprep.subr.bf16.mxu0 0
      %2365 = vmatpush1.bf16.msra.mxu0 0
      %2366 = vmatprep.subr.bf16.mxu0 0
      %2367 = vmatpush1.bf16.msra.mxu0 0
      %2368 = vmatprep.subr.bf16.mxu0 0
      %2369 = vmatpush1.bf16.msra.mxu0 0
      %2370 = vmatprep.subr.bf16.mxu0 0
      %2371 = vmatpush1.bf16.msra.mxu0 %v2313
      %2372 = vmatprep.subr.bf16.mxu0 0
      %2373 = vmatpush2.bf16.msra.mxu0 0
      %2374 = vmatprep.subr.bf16.mxu0 0
      %2375 = vmatpush2.bf16.msra.mxu0 0
      %2376 = vmatprep.subr.bf16.mxu0 0
      %2377 = vmatpush2.bf16.msra.mxu0 0
      %2378 = vmatprep.subr.bf16.mxu0 0
      %2379 = vmatpush2.bf16.msra.mxu0 0
      %2380 = vmatprep.subr.bf16.mxu0 0
      %2381 = vmatpush2.bf16.msra.mxu0 0
      %2382 = vmatprep.subr.bf16.mxu0 0
      %2383 = vmatpush2.bf16.msra.mxu0 0
      %2384 = vmatprep.subr.bf16.mxu0 0
      %2385 = vmatpush2.bf16.msra.mxu0 0
      %2386 = vmatprep.subr.bf16.mxu0 0
      %2387 = vmatpush2.bf16.msra.mxu0 0
      %2388 = vmatprep.mubr.bf16.mxu0 0
      %2389 = vmatmul.mubr.bf16.gmra.mxu0 %v2304
      %v2390 = vpop.f32.mrf.mxu0
      %v2391 = vadd.f32 0.0, %v2390
      %v2392 = vpop.f32.mrf.mxu0
      %v2393 = vpop.f32.mrf.mxu0
      %v2394 = vpop.f32.mrf.mxu0
      %2395 = vdwg.mxu0
      %v2396 = vadd.f32 %v2290, %v2350
      %v2397 = vadd.f32 %v2291, %v2352
      %v2398 = vadd.f32 %v2292, %v2391
      %v2399 = vld [vmem:[%s4] sm:$0xff]
      %2401 = vset.pattern.permute.xlu0 0
      %2402 = vperm.xlu0 %2401, %v2399
      %v2403 = vpop.permute.xlu0 %2402
      %v2405 = vadd.f32 %v2396, %v2403
      %v2406 = vadd.f32 %v2397, %v2403
      %v2407 = vadd.f32 %v2398, %v2403
      %v2408 = vmax.f32 %v2405, 0.0
      %v2409 = vmax.f32 %v2406, 0.0
      %v2410 = vmax.f32 %v2407, 0.0
      %v2411 = vld [vmem:[%s5] sm:$0xf]
      %v2412 = vld [vmem:[%s300] sm:$0x3f]
      %v2413 = vld [vmem:[%s6] sm:$0xff]
      %2415 = vset.pattern.permute.xlu0 0
      %2416 = vperm.xlu0 %2415, %v2413
      %v2417 = vpop.permute.xlu0 %2416
      %v2420 = vcombine.high %v2412, %v2412
      %v2422 = vunpack.c.l.s4 1983009808
      %v2423 = vunpack.c.0.s8 %v2422
      %v2424 = vlaneseq
      %v2425 = vshrl.u32 %v2424, 7
      %v2426 = vsub.s32 %v2423, %v2425
      %v2427 = vrot.slane %v2412, %v2426
      %v2429 = vunpack.c.l.s4 1983009808
      %v2430 = vunpack.c.0.s8 %v2429
      %v2431 = vlaneseq
      %v2432 = vshrl.u32 %v2431, 7
      %v2433 = vsub.s32 %v2430, %v2432
      %v2434 = vrot.slane %v2420, %v2433
      %v2435 = vcombine.high %v2427, %v2427
      %2436 = vrot.lane.b32.xlu0 %v2427, 90
      %v2437 = vpop.permute.xlu0 %2436
      %2438 = vrot.lane.b32.xlu0 %v2435, 90
      %v2439 = vpop.permute.xlu0 %2438
      %2440 = vrot.lane.b32.xlu0 %v2434, 90
      %v2441 = vpop.permute.xlu0 %2440
      %v2442 = vsel %vm1301, %v2437, %v2439
      %v2443 = vsel %vm1301, %v2439, %v2441
      %v2445 = vsel %vm337, %v2411, 0
      %v2448 = vsel %vm341, %v2442, 0
      %v2451 = vsel %vm341, %v2443, 0
      %v2454 = vsel %vm341, %v2441, 0
      %2456 = vmatprep.subr.bf16.mxu0 0
      %2457 = vmatpush1.bf16.msra.mxu0 0
      %2458 = vmatprep.subr.bf16.mxu0 0
      %2459 = vmatpush1.bf16.msra.mxu0 0
      %2460 = vmatprep.subr.bf16.mxu0 0
      %2461 = vmatpush1.bf16.msra.mxu0 0
      %2462 = vmatprep.subr.bf16.mxu0 0
      %2463 = vmatpush1.bf16.msra.mxu0 0
      %2464 = vmatprep.subr.bf16.mxu0 0
      %2465 = vmatpush1.bf16.msra.mxu0 0
      %2466 = vmatprep.subr.bf16.mxu0 0
      %2467 = vmatpush1.bf16.msra.mxu0 0
      %2468 = vmatprep.subr.bf16.mxu0 0
      %2469 = vmatpush1.bf16.msra.mxu0 0
      %2470 = vmatprep.subr.bf16.mxu0 %v2451
      %2471 = vmatpush1.bf16.msra.mxu0 %v2448
      %2472 = vmatprep.subr.bf16.mxu0 0
      %2473 = vmatpush2.bf16.msra.mxu0 0
      %2474 = vmatprep.subr.bf16.mxu0 0
      %2475 = vmatpush2.bf16.msra.mxu0 0
      %2476 = vmatprep.subr.bf16.mxu0 0
      %2477 = vmatpush2.bf16.msra.mxu0 0
      %2478 = vmatprep.subr.bf16.mxu0 0
      %2479 = vmatpush2.bf16.msra.mxu0 0
      %2480 = vmatprep.subr.bf16.mxu0 0
      %2481 = vmatpush2.bf16.msra.mxu0 0
      %2482 = vmatprep.subr.bf16.mxu0 0
      %2483 = vmatpush2.bf16.msra.mxu0 0
      %2484 = vmatprep.subr.bf16.mxu0 0
      %2485 = vmatpush2.bf16.msra.mxu0 0
      %2486 = vmatprep.subr.bf16.mxu0 0
      %2487 = vmatpush2.bf16.msra.mxu0 0
      %2488 = vmatprep.mubr.bf16.mxu0 0
      %2489 = vmatmul.mubr.bf16.gmra.mxu0 %v2445
      %v2490 = vpop.f32.mrf.mxu0
      %v2491 = vadd.f32 %v2417, %v2490
      %v2492 = vpop.f32.mrf.mxu0
      %v2493 = vadd.f32 %v2417, %v2492
      %v2494 = vpop.f32.mrf.mxu0
      %v2495 = vpop.f32.mrf.mxu0
      %2496 = vdwg.mxu0
      %2497 = vmatprep.subr.bf16.mxu0 0
      %2498 = vmatpush1.bf16.msra.mxu0 0
      %2499 = vmatprep.subr.bf16.mxu0 0
      %2500 = vmatpush1.bf16.msra.mxu0 0
      %2501 = vmatprep.subr.bf16.mxu0 0
      %2502 = vmatpush1.bf16.msra.mxu0 0
      %2503 = vmatprep.subr.bf16.mxu0 0
      %2504 = vmatpush1.bf16.msra.mxu0 0
      %2505 = vmatprep.subr.bf16.mxu0 0
      %2506 = vmatpush1.bf16.msra.mxu0 0
      %2507 = vmatprep.subr.bf16.mxu0 0
      %2508 = vmatpush1.bf16.msra.mxu0 0
      %2509 = vmatprep.subr.bf16.mxu0 0
      %2510 = vmatpush1.bf16.msra.mxu0 0
      %2511 = vmatprep.subr.bf16.mxu0 0
      %2512 = vmatpush1.bf16.msra.mxu0 %v2454
      %2513 = vmatprep.subr.bf16.mxu0 0
      %2514 = vmatpush2.bf16.msra.mxu0 0
      %2515 = vmatprep.subr.bf16.mxu0 0
      %2516 = vmatpush2.bf16.msra.mxu0 0
      %2517 = vmatprep.subr.bf16.mxu0 0
      %2518 = vmatpush2.bf16.msra.mxu0 0
      %2519 = vmatprep.subr.bf16.mxu0 0
      %2520 = vmatpush2.bf16.msra.mxu0 0
      %2521 = vmatprep.subr.bf16.mxu0 0
      %2522 = vmatpush2.bf16.msra.mxu0 0
      %2523 = vmatprep.subr.bf16.mxu0 0
      %2524 = vmatpush2.bf16.msra.mxu0 0
      %2525 = vmatprep.subr.bf16.mxu0 0
      %2526 = vmatpush2.bf16.msra.mxu0 0
      %2527 = vmatprep.subr.bf16.mxu0 0
      %2528 = vmatpush2.bf16.msra.mxu0 0
      %2529 = vmatprep.mubr.bf16.mxu0 0
      %2530 = vmatmul.mubr.bf16.gmra.mxu0 %v2445
      %v2531 = vpop.f32.mrf.mxu0
      %v2532 = vadd.f32 %v2417, %v2531
      %v2533 = vpop.f32.mrf.mxu0
      %v2534 = vpop.f32.mrf.mxu0
      %v2535 = vpop.f32.mrf.mxu0
      %2536 = vdwg.mxu0
      %v2537 = vadd.f32 %v2408, %v2491
      %v2538 = vadd.f32 %v2409, %v2493
      %v2539 = vadd.f32 %v2410, %v2532
      %v2540 = vmax.f32 %v2537, 0.0
      %v2541 = vmax.f32 %v2538, 0.0
      %v2542 = vmax.f32 %v2539, 0.0
      %2543 = vst [vmem:[%s305] sm:$0xff] %v2540
      %2544 = vst [vmem:[%s305 + $0x8] sm:$0xff] %v2541
      %vm2545 = vcmask 261120
      %2546 = vst.msk [vmem:[%s305 + $0x10] sm:$0xff] %vm2545, %v2542
      %p2547 = scmp.lt.s32.totalorder %s19, 1
      %s2548 = scalar_select %p2547, %s19, 1
      %s2549 = smul.addr %s2548, 3
      %s2550 = smul.addr %s2549, 8
      %s2551 = scalar_lea.vmem %s8, %s2550
      // Predicated region
      $region53: #{res_encoder_forward.1} parent=51 // pred_check
        %p2552 = pneg %p210
      $region54: #{res_encoder_forward.1} parent=51 // pred_check_branch
        %2554 = sbr.rel (%p2552) target = $region56
      $region55: #{res_encoder_forward.1} parent=51 // pred_region
        _
      $region56: #{res_encoder_forward.1} parent=51 // pred_fallthru
        _
    $region52: #{res_encoder_forward.1} parent=5 // pred_fallthru
      _
    %p2555 = scmp.le.s32.totalorder 2, %s14
    // Predicated region
    $region57: #{res_encoder_forward.1} parent=5 // pred_check
      %p2556 = pneg %p2555
    $region58: #{res_encoder_forward.1} parent=5 // pred_check_branch
      %2558 = sbr.rel (%p2556) target = $region60
    $region59: #{res_encoder_forward.1} parent=5 // pred_region
      %s2559 = ssub.s32 %s14, 2
      // Predicated region
      $region61: #{res_encoder_forward.1} parent=59 // pred_check
        %p2560 = pneg %p216
      $region62: #{res_encoder_forward.1} parent=59 // pred_check_branch
        %2562 = sbr.rel (%p2560) target = $region64
      $region63: #{res_encoder_forward.1} parent=59 // pred_region
        %p2563 = scmp.lt.s32.totalorder %s20, 1
        %s2564 = scalar_select %p2563, %s20, 1
        %s2565 = smul.addr %s2564, 3
        %s2566 = smul.addr %s2565, 8
        %s2567 = scalar_lea.vmem %s8, %s2566
      $region64: #{res_encoder_forward.1} parent=59 // pred_fallthru
        _
    $region60: #{res_encoder_forward.1} parent=5 // pred_fallthru
      _
  $region6: #{res_encoder_forward.1} parent=0 // loop_footer
    %s18 = sadd.s32 1, %s14
  $region7: #{res_encoder_forward.1} parent=0 // loop_footer_branch
    %13 = sbr.rel target = $region3
  $region8: #{res_encoder_forward.1} parent=0 // loop_exit
    _

</llo_original>
